<compile_context>
chip_gen: v7x
topology: tpu7x:2x2x1
jax: 0.10.0
libtpu: 0.0.40
codegen_flags: <defaults>
</compile_context>

<pallas_src>
import math
import jax
import jax.numpy as jnp
from jax.experimental import pallas as pl
from jax.experimental.pallas import tpu as pltpu

NEG_INF = -1e9
LN_EPS = 1e-5


def _layernorm(x, g, b):
    mu = jnp.mean(x, axis=-1, keepdims=True)
    var = jnp.mean(jnp.square(x - mu), axis=-1, keepdims=True)
    return (x - mu) * jax.lax.rsqrt(var + LN_EPS) * g + b


def _causal_mask(S):
    i = jnp.arange(S)[:, None]
    j = jnp.arange(S)[None, :]
    return jnp.where(j > i, NEG_INF, 0.0).astype(jnp.float32)


# ----------------------------- Pallas kernels ------------------------------

def make_transformer_kernel(*, num_heads, n_ctx, n_deep):
    """Fused CLIP text transformer. grid = (batch b, layer l); x_ref is the
    VMEM-resident activation for batch element b (output BlockSpec constant
    over l)."""
    H = num_heads

    def kernel(prompts_ref, pos_ref, ctx_ref, mask_ref,
               ln1g_ref, ln1b_ref, wqkv_ref, bqkv_ref, wo_ref, bo_ref,
               ln2g_ref, ln2b_ref, wfc_ref, bfc_ref, wpr_ref, bpr_ref,
               x_ref):
        l = pl.program_id(1)
        _, S, D = x_ref.shape
        hd = D // H
        scale = 1.0 / math.sqrt(hd)

        # Layer 0: x = prompts + positional_embedding (fused into the kernel).
        @pl.when(l == 0)
        def _init():
            x_ref[...] = prompts_ref[...] + pos_ref[...][None]

        # MaPLe deep prompting: layers 1..n_deep replace tokens [1, 1+n_ctx)
        # with the learned compound prompt before the block runs.
        if n_deep > 0:
            @pl.when((l >= 1) & (l <= n_deep))
            def _splice():
                xb = x_ref[0]
                x_ref[0] = jnp.concatenate(
                    [xb[:1], ctx_ref[...], xb[1 + n_ctx:]], axis=0)

        x = x_ref[0]                                            # (S, D), f32

        # ---------------- attention: x += MHA(ln1(x)) ----------------------
        xl = _layernorm(x, ln1g_ref[...], ln1b_ref[...])
        qkv = jnp.dot(xl.astype(wqkv_ref.dtype), wqkv_ref[...],
                      preferred_element_type=jnp.float32) + bqkv_ref[...]
        q, k, v = qkv[:, :D], qkv[:, D:2 * D], qkv[:, 2 * D:]

        def split_heads(t):                                     # (S,D)->(H,S,hd)
            return jnp.stack([t[:, h * hd:(h + 1) * hd] for h in range(H)],
                             axis=0)

        qh, kh, vh = split_heads(q), split_heads(k), split_heads(v)
        s = jnp.einsum('hqe,hke->hqk', qh, kh,
                       preferred_element_type=jnp.float32) * scale
        s = s + mask_ref[...][None]
        s = s - jnp.max(s, axis=-1, keepdims=True)
        e = jnp.exp(s)
        p = e * pl.reciprocal(jnp.sum(e, axis=-1, keepdims=True), approx=True)
        attn_ctx = jnp.einsum('hqk,hke->hqe', p, vh,
                              preferred_element_type=jnp.float32)   # (H,S,hd)
        attn_ctx = jnp.concatenate([attn_ctx[h] for h in range(H)], axis=-1)
        attn = jnp.dot(attn_ctx.astype(wo_ref.dtype), wo_ref[...],
                       preferred_element_type=jnp.float32) + bo_ref[...]
        x1 = x + attn

        # ---------------- MLP: x += c_proj(QuickGELU(c_fc(ln2(x)))) --------
        xl2 = _layernorm(x1, ln2g_ref[...], ln2b_ref[...])
        h1 = jnp.dot(xl2.astype(wfc_ref.dtype), wfc_ref[...],
                     preferred_element_type=jnp.float32) + bfc_ref[...]
        h1 = h1 * jax.nn.sigmoid(1.702 * h1)                    # QuickGELU
        mlp = jnp.dot(h1.astype(wpr_ref.dtype), wpr_ref[...],
                      preferred_element_type=jnp.float32) + bpr_ref[...]
        x_ref[0] = x1 + mlp

    return kernel


def head_kernel(eot_ref, x_ref, lng_ref, lnb_ref, proj_ref, out_ref):
    """ln_final of the EOT row only -> @ text_projection. eot is scalar
    prefetched (SMEM); the row is selected with an iota mask (no one-hot
    matmul, no dynamic sublane slice)."""
    b = pl.program_id(0)
    S, D = x_ref.shape[1], x_ref.shape[2]
    xb = x_ref[0]                                               # (S, D)
    e = eot_ref[b]
    row_ids = jax.lax.broadcasted_iota(jnp.int32, (S, 1), 0)
    sel = jnp.sum(jnp.where(row_ids == e, xb, 0.0), axis=0, keepdims=True)
    xl = _layernorm(sel, lng_ref[...], lnb_ref[...])            # (1, D)
    out_ref[0] = jnp.dot(xl, proj_ref[...],
                         preferred_element_type=jnp.float32)


# ------------------------------ wrappers ------------------------------------

def text_encoder_forward(prompts, tokenized_prompts, compound_prompts_deeper_text,
                         pos_emb, stacked, lnf_g, lnf_b, text_projection,
                         *, n_ctx, num_heads):
    B, S, D = prompts.shape
    L = stacked['wqkv'].shape[0]
    Dff = stacked['wfc'].shape[-1]
    P = text_projection.shape[1]
    n_deep = len(compound_prompts_deeper_text)

    if n_deep > 0:
        ctx_stack = jnp.stack(compound_prompts_deeper_text, axis=0)  # (n_deep,n_ctx,D)
        ctx_idx = lambda b, l: (jnp.maximum(jnp.minimum(l - 1, n_deep - 1), 0), 0, 0)
    else:
        ctx_stack = jnp.zeros((1, max(n_ctx, 1), D), jnp.float32)
        ctx_idx = lambda b, l: (0, 0, 0)
    n_ctx_eff = ctx_stack.shape[1]

    mask = _causal_mask(S)
    kernel = make_transformer_kernel(num_heads=num_heads, n_ctx=n_ctx_eff,
                                     n_deep=n_deep)

    lmap3 = lambda b, l: (l, 0, 0)
    in_specs = [
        pl.BlockSpec((1, S, D), lambda b, l: (b, 0, 0)),        # prompts
        pl.BlockSpec((S, D),    lambda b, l: (0, 0)),           # pos_emb
        pl.BlockSpec((None, n_ctx_eff, D), ctx_idx),            # compound prompts
        pl.BlockSpec((S, S),    lambda b, l: (0, 0)),           # causal mask
        pl.BlockSpec((None, 1, D),     lmap3),                  # ln1_g
        pl.BlockSpec((None, 1, D),     lmap3),                  # ln1_b
        pl.BlockSpec((None, D, 3 * D), lmap3),                  # wqkv (bf16)
        pl.BlockSpec((None, 1, 3 * D), lmap3),                  # bqkv
        pl.BlockSpec((None, D, D),     lmap3),                  # wo (bf16)
        pl.BlockSpec((None, 1, D),     lmap3),                  # bo
        pl.BlockSpec((None, 1, D),     lmap3),                  # ln2_g
        pl.BlockSpec((None, 1, D),     lmap3),                  # ln2_b
        pl.BlockSpec((None, D, Dff),   lmap3),                  # wfc (bf16)
        pl.BlockSpec((None, 1, Dff),   lmap3),                  # bfc
        pl.BlockSpec((None, Dff, D),   lmap3),                  # wpr (bf16)
        pl.BlockSpec((None, 1, D),     lmap3),                  # bpr
    ]

    x = pl.pallas_call(
        kernel,
        out_shape=jax.ShapeDtypeStruct((B, S, D), jnp.float32),
        grid_spec=pltpu.PrefetchScalarGridSpec(
            num_scalar_prefetch=0,
            grid=(B, L),
            in_specs=in_specs,
            out_specs=pl.BlockSpec((1, S, D), lambda b, l: (b, 0, 0)),
        ),
        compiler_params=pltpu.CompilerParams(
            dimension_semantics=("parallel", "arbitrary"),
            vmem_limit_bytes=32 * 1024 * 1024,
        ),
    )(prompts, pos_emb, ctx_stack, mask,
      stacked['ln1_g'], stacked['ln1_b'], stacked['wqkv'], stacked['bqkv'],
      stacked['wo'], stacked['bo'], stacked['ln2_g'], stacked['ln2_b'],
      stacked['wfc'], stacked['bfc'], stacked['wpr'], stacked['bpr'])

    # EOT index (argmax over token ids) computed in plain JAX; the indices are
    # scalar-prefetched into the head kernel.
    eot = jnp.argmax(tokenized_prompts, axis=-1).astype(jnp.int32)     # (B,)
    out = pl.pallas_call(
        head_kernel,
        out_shape=jax.ShapeDtypeStruct((B, 1, P), jnp.float32),
        grid_spec=pltpu.PrefetchScalarGridSpec(
            num_scalar_prefetch=1,
            grid=(B,),
            in_specs=[
                pl.BlockSpec((1, S, D), lambda b, eot_ref: (b, 0, 0)),
                pl.BlockSpec((1, D),    lambda b, eot_ref: (0, 0)),
                pl.BlockSpec((1, D),    lambda b, eot_ref: (0, 0)),
                pl.BlockSpec((D, P),    lambda b, eot_ref: (0, 0)),
            ],
            out_specs=pl.BlockSpec((1, 1, P), lambda b, eot_ref: (b, 0, 0)),
        ),
        compiler_params=pltpu.CompilerParams(
            dimension_semantics=("parallel",),
        ),
    )(eot, x, lnf_g, lnf_b, text_projection)
    return out[:, 0, :]


# -------------------------- params / reference ------------------------------

def init_clip_text(key, *, D, H, Dff, L, P, S):
    kiter = iter(jax.random.split(key, 20 * L + 10))

    def nrm(shape, scale=0.02):
        return scale * jax.random.normal(next(kiter), shape, dtype=jnp.float32)

    pos_emb = nrm((S, D))
    raw_blocks = []
    for _ in range(L):
        raw_blocks.append(dict(
            Wq=nrm((D, D)), bq=nrm((D,)),
            Wk=nrm((D, D)), bk=nrm((D,)),
            Wv=nrm((D, D)), bv=nrm((D,)),
            Wo=nrm((D, D)), bo=nrm((D,)),
            ln1_g=1.0 + nrm((D,), 0.01), ln1_b=nrm((D,), 0.01),
            Wfc=nrm((Dff, D)), bfc=nrm((Dff,)),
            Wpr=nrm((D, Dff)), bpr=nrm((D,)),
            ln2_g=1.0 + nrm((D,), 0.01), ln2_b=nrm((D,), 0.01),
        ))
    lnf_g = 1.0 + nrm((D,), 0.01)
    lnf_b = nrm((D,), 0.01)
    proj = nrm((D, P), scale=D ** -0.5)
    return pos_emb, raw_blocks, lnf_g, lnf_b, proj


def stack_layer_params(raw_blocks, weight_dtype=jnp.bfloat16):
    """Stack per-layer weights on a leading L axis in the kernel's layout.
    Matmul weights -> bf16; LN params & biases stay f32."""
    def st(fn, dtype=None):
        a = jnp.stack([fn(r) for r in raw_blocks], axis=0)
        return a.astype(dtype) if dtype is not None else a

    return dict(
        ln1_g=st(lambda r: r['ln1_g'].reshape(1, -1)),
        ln1_b=st(lambda r: r['ln1_b'].reshape(1, -1)),
        wqkv=st(lambda r: jnp.concatenate([r['Wq'].T, r['Wk'].T, r['Wv'].T],
                                          axis=1), weight_dtype),
        bqkv=st(lambda r: jnp.concatenate([r['bq'], r['bk'], r['bv']]
                                          ).reshape(1, -1)),
        wo=st(lambda r: r['Wo'].T, weight_dtype),
        bo=st(lambda r: r['bo'].reshape(1, -1)),
        ln2_g=st(lambda r: r['ln2_g'].reshape(1, -1)),
        ln2_b=st(lambda r: r['ln2_b'].reshape(1, -1)),
        wfc=st(lambda r: r['Wfc'].T, weight_dtype),
        bfc=st(lambda r: r['bfc'].reshape(1, -1)),
        wpr=st(lambda r: r['Wpr'].T, weight_dtype),
        bpr=st(lambda r: r['bpr'].reshape(1, -1)),
    )


def reference_text_encoder(prompts, tokenized, compound, pos, raw_blocks,
                           lnf_g, lnf_b, proj, n_ctx, H):
    B, S, D = prompts.shape
    Hd = D // H
    mask = _causal_mask(S)
    x = prompts + pos[None]
    for i, p in enumerate(raw_blocks):
        if i >= 1 and (i - 1) < len(compound):
            ctx = jnp.broadcast_to(compound[i - 1][None], (B, n_ctx, D))
            x = jnp.concatenate([x[:, :1], ctx, x[:, 1 + n_ctx:]], axis=1)
        xl = _layernorm(x, p['ln1_g'], p['ln1_b'])
        q = (xl @ p['Wq'].T + p['bq']).reshape(B, S, H, Hd).transpose(0, 2, 1, 3)
        k = (xl @ p['Wk'].T + p['bk']).reshape(B, S, H, Hd).transpose(0, 2, 1, 3)
        v = (xl @ p['Wv'].T + p['bv']).reshape(B, S, H, Hd).transpose(0, 2, 1, 3)
        s = jnp.einsum('bhqe,bhke->bhqk', q, k) / math.sqrt(Hd) + mask
        a = jax.nn.softmax(s, axis=-1)
        c = jnp.einsum('bhqk,bhke->bhqe', a, v).transpose(0, 2, 1, 3).reshape(B, S, D)
        x = x + c @ p['Wo'].T + p['bo']
        xl2 = _layernorm(x, p['ln2_g'], p['ln2_b'])
        h1 = xl2 @ p['Wfc'].T + p['bfc']
        h1 = h1 * jax.nn.sigmoid(1.702 * h1)
        x = x + h1 @ p['Wpr'].T + p['bpr']
    x = _layernorm(x, lnf_g, lnf_b)
    eot = jnp.argmax(tokenized, axis=-1)
    sel = x[jnp.arange(B), eot]
    return sel @ proj


# --------------------------------- main --------------------------------------

if __name__ == "__main__":
    B, S, D, H, L, P = 2, 8, 32, 4, 3, 32
    Dff = 4 * D
    n_ctx = 2          # MaPLe context tokens
    n_deep = 2         # compound prompts for deeper layers (prompt depth - 1)

    key = jax.random.PRNGKey(0)
    k_prompts, k_compound, k_params = jax.random.split(key, 3)

    prompts = 0.02 * jax.random.normal(k_prompts, (B, S, D), dtype=jnp.float32)
    compound = [0.02 * jax.random.normal(k, (n_ctx, D), dtype=jnp.float32)
                for k in jax.random.split(k_compound, n_deep)]
    # tokenized prompts: EOT token (largest id) marks the token to select
    tokenized = jnp.array([[3, 7, 2, 9, 4, 49407, 0, 0],
                           [5, 1, 8, 2, 6, 11, 49407, 0]], dtype=jnp.int32)

    pos_emb, raw_blocks, lnf_g, lnf_b, proj = init_clip_text(
        k_params, D=D, H=H, Dff=Dff, L=L, P=P, S=S)
    stacked = stack_layer_params(raw_blocks)

    out = text_encoder_forward(
        prompts, tokenized, compound, pos_emb, stacked,
        lnf_g.reshape(1, D), lnf_b.reshape(1, D), proj,
        n_ctx=n_ctx, num_heads=H)
    out = jax.block_until_ready(out)

    ref = reference_text_encoder(prompts, tokenized, compound, pos_emb,
                                 raw_blocks, lnf_g, lnf_b, proj, n_ctx, H)
    assert out.shape == (B, P), out.shape
    assert bool(jnp.allclose(out, ref, atol=5e-2, rtol=5e-2)), (
        "mismatch vs reference: max abs diff = %s" % float(jnp.max(jnp.abs(out - ref))))
    print("KERNEL_OK")
</pallas_src>

<mosaic_0001>
module attributes {stable_mosaic.version = 11 : i64} {
  func.func @kernel(%arg0: i32, %arg1: i32, %arg2: memref<1x8x32xf32, #tpu.memory_space<vmem>>, %arg3: memref<8x32xf32, #tpu.memory_space<vmem>>, %arg4: memref<1x2x32xf32, #tpu.memory_space<vmem>>, %arg5: memref<8x8xf32, #tpu.memory_space<vmem>>, %arg6: memref<1x1x32xf32, #tpu.memory_space<vmem>>, %arg7: memref<1x1x32xf32, #tpu.memory_space<vmem>>, %arg8: memref<1x32x96xbf16, #tpu.memory_space<vmem>>, %arg9: memref<1x1x96xf32, #tpu.memory_space<vmem>>, %arg10: memref<1x32x32xbf16, #tpu.memory_space<vmem>>, %arg11: memref<1x1x32xf32, #tpu.memory_space<vmem>>, %arg12: memref<1x1x32xf32, #tpu.memory_space<vmem>>, %arg13: memref<1x1x32xf32, #tpu.memory_space<vmem>>, %arg14: memref<1x32x128xbf16, #tpu.memory_space<vmem>>, %arg15: memref<1x1x128xf32, #tpu.memory_space<vmem>>, %arg16: memref<1x128x32xbf16, #tpu.memory_space<vmem>>, %arg17: memref<1x1x32xf32, #tpu.memory_space<vmem>>, %arg18: memref<1x8x32xf32, #tpu.memory_space<vmem>>) attributes {dimension_semantics = [#tpu.dimension_semantics<parallel>, #tpu.dimension_semantics<arbitrary>], iteration_bounds = array<i64: 2, 3>, scalar_prefetch = 0 : i64, scratch_operands = 0 : i64, tpu.core_type = #tpu.core_type<tc>, window_params = [{transform_indices = @transform_0, window_bounds = array<i64: 1, 8, 32>}, {pipeline_mode = #tpu.pipeline_mode<synchronous>, transform_indices = @transform_1, window_bounds = array<i64: 8, 32>}, {transform_indices = @transform_2, window_bounds = array<i64: 1, 2, 32>}, {pipeline_mode = #tpu.pipeline_mode<synchronous>, transform_indices = @transform_3, window_bounds = array<i64: 8, 8>}, {transform_indices = @transform_4, window_bounds = array<i64: 1, 1, 32>}, {transform_indices = @transform_5, window_bounds = array<i64: 1, 1, 32>}, {transform_indices = @transform_6, window_bounds = array<i64: 1, 32, 96>}, {transform_indices = @transform_7, window_bounds = array<i64: 1, 1, 96>}, {transform_indices = @transform_8, window_bounds = array<i64: 1, 32, 32>}, {transform_indices = @transform_9, window_bounds = array<i64: 1, 1, 32>}, {transform_indices = @transform_10, window_bounds = array<i64: 1, 1, 32>}, {transform_indices = @transform_11, window_bounds = array<i64: 1, 1, 32>}, {transform_indices = @transform_12, window_bounds = array<i64: 1, 32, 128>}, {transform_indices = @transform_13, window_bounds = array<i64: 1, 1, 128>}, {transform_indices = @transform_14, window_bounds = array<i64: 1, 128, 32>}, {transform_indices = @transform_15, window_bounds = array<i64: 1, 1, 32>}, {transform_indices = @transform_16, window_bounds = array<i64: 1, 8, 32>}]} {
    %c0_i32 = arith.constant 0 : i32
    %0 = arith.cmpi eq, %arg1, %c0_i32 : i32
    %1 = arith.extui %0 : i1 to i32
    %c0_i32_0 = arith.constant 0 : i32
    %2 = arith.cmpi ne, %1, %c0_i32_0 : i32
    scf.if %2 {
      %c0_65 = arith.constant 0 : index
      %c0_66 = arith.constant 0 : index
      %c0_67 = arith.constant 0 : index
      %164 = vector.load %arg2[%c0_65, %c0_66, %c0_67] : memref<1x8x32xf32, #tpu.memory_space<vmem>>, vector<1x8x32xf32>
      %c0_68 = arith.constant 0 : index
      %c0_69 = arith.constant 0 : index
      %165 = vector.load %arg3[%c0_68, %c0_69] : memref<8x32xf32, #tpu.memory_space<vmem>>, vector<8x32xf32>
      %166 = vector.shape_cast %165 : vector<8x32xf32> to vector<1x8x32xf32>
      %167 = arith.addf %164, %166 : vector<1x8x32xf32>
      %c0_70 = arith.constant 0 : index
      %c0_71 = arith.constant 0 : index
      %c0_72 = arith.constant 0 : index
      %168 = vector.load %arg18[%c0_70, %c0_71, %c0_72] : memref<1x8x32xf32, #tpu.memory_space<vmem>>, vector<1x8x32xf32>
      tpu.vector_store %arg18[%c0_70, %c0_71, %c0_72], %167 {strides = array<i32>} : memref<1x8x32xf32, #tpu.memory_space<vmem>>, vector<1x8x32xf32>,
    } else {
    }
    %c1_i32 = arith.constant 1 : i32
    %3 = arith.cmpi sge, %arg1, %c1_i32 : i32
    %c2_i32 = arith.constant 2 : i32
    %4 = arith.cmpi sle, %arg1, %c2_i32 : i32
    %5 = arith.andi %3, %4 : i1
    %6 = arith.extui %5 : i1 to i32
    %c0_i32_1 = arith.constant 0 : i32
    %7 = arith.cmpi ne, %6, %c0_i32_1 : i32
    scf.if %7 {
      %c0_65 = arith.constant 0 : index
      %c0_66 = arith.constant 0 : index
      %c0_67 = arith.constant 0 : index
      %164 = vector.load %arg18[%c0_65, %c0_66, %c0_67] : memref<1x8x32xf32, #tpu.memory_space<vmem>>, vector<1x8x32xf32>
      %165 = vector.shape_cast %164 : vector<1x8x32xf32> to vector<8x32xf32>
      %166 = vector.extract_strided_slice %165 {offsets = [0, 0], sizes = [1, 32], strides = [1, 1]} : vector<8x32xf32> to vector<1x32xf32>
      %c0_68 = arith.constant 0 : index
      %c0_69 = arith.constant 0 : index
      %c0_70 = arith.constant 0 : index
      %167 = vector.load %arg4[%c0_68, %c0_69, %c0_70] : memref<1x2x32xf32, #tpu.memory_space<vmem>>, vector<1x2x32xf32>
      %168 = vector.shape_cast %167 : vector<1x2x32xf32> to vector<2x32xf32>
      %169 = vector.extract_strided_slice %165 {offsets = [3, 0], sizes = [5, 32], strides = [1, 1]} : vector<8x32xf32> to vector<5x32xf32>
      %170 = tpu.concatenate %166, %168, %169 in 0 : vector<1x32xf32>, vector<2x32xf32>, vector<5x32xf32> -> vector<8x32xf32>
      %c0_71 = arith.constant 0 : index
      %c0_72 = arith.constant 0 : index
      %c0_73 = arith.constant 0 : index
      %171 = vector.load %arg18[%c0_71, %c0_72, %c0_73] : memref<1x8x32xf32, #tpu.memory_space<vmem>>, vector<1x8x32xf32>
      %172 = vector.shape_cast %171 : vector<1x8x32xf32> to vector<8x32xf32>
      %173 = vector.shape_cast %170 : vector<8x32xf32> to vector<1x8x32xf32>
      tpu.vector_store %arg18[%c0_71, %c0_72, %c0_73], %173 {strides = array<i32>} : memref<1x8x32xf32, #tpu.memory_space<vmem>>, vector<1x8x32xf32>,
    } else {
    }
    %c0 = arith.constant 0 : index
    %c0_2 = arith.constant 0 : index
    %c0_3 = arith.constant 0 : index
    %8 = vector.load %arg18[%c0, %c0_2, %c0_3] : memref<1x8x32xf32, #tpu.memory_space<vmem>>, vector<1x8x32xf32>
    %9 = vector.shape_cast %8 : vector<1x8x32xf32> to vector<8x32xf32>
    %c0_4 = arith.constant 0 : index
    %c0_5 = arith.constant 0 : index
    %c0_6 = arith.constant 0 : index
    %10 = vector.load %arg6[%c0_4, %c0_5, %c0_6] : memref<1x1x32xf32, #tpu.memory_space<vmem>>, vector<1x1x32xf32>
    %11 = vector.shape_cast %10 : vector<1x1x32xf32> to vector<1x32xf32>
    %c0_7 = arith.constant 0 : index
    %c0_8 = arith.constant 0 : index
    %c0_9 = arith.constant 0 : index
    %12 = vector.load %arg7[%c0_7, %c0_8, %c0_9] : memref<1x1x32xf32, #tpu.memory_space<vmem>>, vector<1x1x32xf32>
    %13 = vector.shape_cast %12 : vector<1x1x32xf32> to vector<1x32xf32>
    %cst = arith.constant dense<0.000000e+00> : vector<8xf32>
    %14 = vector.multi_reduction <add>, %9, %cst [1] : vector<8x32xf32> to vector<8xf32>
    %15 = vector.shape_cast %14 : vector<8xf32> to vector<8x1xf32>
    %cst_10 = arith.constant 3.200000e+01 : f32
    %16 = vector.broadcast %cst_10 : f32 to vector<8x1xf32>
    %17 = arith.divf %15, %16 : vector<8x1xf32>
    %18 = vector.broadcast %17 : vector<8x1xf32> to vector<8x32xf32>
    %19 = arith.subf %9, %18 : vector<8x32xf32>
    %20 = arith.mulf %19, %19 : vector<8x32xf32>
    %cst_11 = arith.constant dense<0.000000e+00> : vector<8xf32>
    %21 = vector.multi_reduction <add>, %20, %cst_11 [1] : vector<8x32xf32> to vector<8xf32>
    %22 = vector.shape_cast %21 : vector<8xf32> to vector<8x1xf32>
    %cst_12 = arith.constant 3.200000e+01 : f32
    %23 = vector.broadcast %cst_12 : f32 to vector<8x1xf32>
    %24 = arith.divf %22, %23 : vector<8x1xf32>
    %25 = vector.broadcast %17 : vector<8x1xf32> to vector<8x32xf32>
    %26 = arith.subf %9, %25 : vector<8x32xf32>
    %cst_13 = arith.constant 9.99999974E-6 : f32
    %27 = vector.broadcast %cst_13 : f32 to vector<8x1xf32>
    %28 = arith.addf %24, %27 : vector<8x1xf32>
    %29 = math.rsqrt %28 : vector<8x1xf32>
    %30 = vector.broadcast %29 : vector<8x1xf32> to vector<8x32xf32>
    %31 = arith.mulf %26, %30 : vector<8x32xf32>
    %32 = vector.broadcast %11 : vector<1x32xf32> to vector<8x32xf32>
    %33 = arith.mulf %31, %32 : vector<8x32xf32>
    %34 = vector.broadcast %13 : vector<1x32xf32> to vector<8x32xf32>
    %35 = arith.addf %33, %34 : vector<8x32xf32>
    %36 = arith.truncf %35 : vector<8x32xf32> to vector<8x32xbf16>
    %c0_14 = arith.constant 0 : index
    %c0_15 = arith.constant 0 : index
    %c0_16 = arith.constant 0 : index
    %37 = vector.load %arg8[%c0_14, %c0_15, %c0_16] : memref<1x32x96xbf16, #tpu.memory_space<vmem>>, vector<1x32x96xbf16>
    %38 = vector.shape_cast %37 : vector<1x32x96xbf16> to vector<32x96xbf16>
    %cst_17 = arith.constant dense<0.000000e+00> : vector<8x96xf32>
    %39 = tpu.matmul %36, %38, %cst_17 {dimension_numbers = #tpu.dot_dimension_numbers<[1], [0], [0], [1], [0, 0, 1, 1], [], []>} : vector<8x32xbf16>, vector<32x96xbf16>, vector<8x96xf32> -> vector<8x96xf32>
    %c0_18 = arith.constant 0 : index
    %c0_19 = arith.constant 0 : index
    %c0_20 = arith.constant 0 : index
    %40 = vector.load %arg9[%c0_18, %c0_19, %c0_20] : memref<1x1x96xf32, #tpu.memory_space<vmem>>, vector<1x1x96xf32>
    %41 = vector.shape_cast %40 : vector<1x1x96xf32> to vector<1x96xf32>
    %42 = vector.broadcast %41 : vector<1x96xf32> to vector<8x96xf32>
    %43 = arith.addf %39, %42 : vector<8x96xf32>
    %44 = vector.extract_strided_slice %43 {offsets = [0, 0], sizes = [8, 32], strides = [1, 1]} : vector<8x96xf32> to vector<8x32xf32>
    %45 = vector.extract_strided_slice %43 {offsets = [0, 32], sizes = [8, 32], strides = [1, 1]} : vector<8x96xf32> to vector<8x32xf32>
    %46 = vector.extract_strided_slice %43 {offsets = [0, 64], sizes = [8, 32], strides = [1, 1]} : vector<8x96xf32> to vector<8x32xf32>
    %47 = vector.extract_strided_slice %44 {offsets = [0, 0], sizes = [8, 8], strides = [1, 1]} : vector<8x32xf32> to vector<8x8xf32>
    %48 = vector.extract_strided_slice %44 {offsets = [0, 8], sizes = [8, 8], strides = [1, 1]} : vector<8x32xf32> to vector<8x8xf32>
    %49 = vector.extract_strided_slice %44 {offsets = [0, 16], sizes = [8, 8], strides = [1, 1]} : vector<8x32xf32> to vector<8x8xf32>
    %50 = vector.extract_strided_slice %44 {offsets = [0, 24], sizes = [8, 8], strides = [1, 1]} : vector<8x32xf32> to vector<8x8xf32>
    %51 = vector.shape_cast %47 : vector<8x8xf32> to vector<1x8x8xf32>
    %52 = vector.shape_cast %48 : vector<8x8xf32> to vector<1x8x8xf32>
    %53 = vector.shape_cast %49 : vector<8x8xf32> to vector<1x8x8xf32>
    %54 = vector.shape_cast %50 : vector<8x8xf32> to vector<1x8x8xf32>
    %55 = tpu.concatenate %51, %52, %53, %54 in 0 : vector<1x8x8xf32>, vector<1x8x8xf32>, vector<1x8x8xf32>, vector<1x8x8xf32> -> vector<4x8x8xf32>
    %56 = vector.extract_strided_slice %45 {offsets = [0, 0], sizes = [8, 8], strides = [1, 1]} : vector<8x32xf32> to vector<8x8xf32>
    %57 = vector.extract_strided_slice %45 {offsets = [0, 8], sizes = [8, 8], strides = [1, 1]} : vector<8x32xf32> to vector<8x8xf32>
    %58 = vector.extract_strided_slice %45 {offsets = [0, 16], sizes = [8, 8], strides = [1, 1]} : vector<8x32xf32> to vector<8x8xf32>
    %59 = vector.extract_strided_slice %45 {offsets = [0, 24], sizes = [8, 8], strides = [1, 1]} : vector<8x32xf32> to vector<8x8xf32>
    %60 = vector.shape_cast %56 : vector<8x8xf32> to vector<1x8x8xf32>
    %61 = vector.shape_cast %57 : vector<8x8xf32> to vector<1x8x8xf32>
    %62 = vector.shape_cast %58 : vector<8x8xf32> to vector<1x8x8xf32>
    %63 = vector.shape_cast %59 : vector<8x8xf32> to vector<1x8x8xf32>
    %64 = tpu.concatenate %60, %61, %62, %63 in 0 : vector<1x8x8xf32>, vector<1x8x8xf32>, vector<1x8x8xf32>, vector<1x8x8xf32> -> vector<4x8x8xf32>
    %65 = vector.extract_strided_slice %46 {offsets = [0, 0], sizes = [8, 8], strides = [1, 1]} : vector<8x32xf32> to vector<8x8xf32>
    %66 = vector.extract_strided_slice %46 {offsets = [0, 8], sizes = [8, 8], strides = [1, 1]} : vector<8x32xf32> to vector<8x8xf32>
    %67 = vector.extract_strided_slice %46 {offsets = [0, 16], sizes = [8, 8], strides = [1, 1]} : vector<8x32xf32> to vector<8x8xf32>
    %68 = vector.extract_strided_slice %46 {offsets = [0, 24], sizes = [8, 8], strides = [1, 1]} : vector<8x32xf32> to vector<8x8xf32>
    %69 = vector.shape_cast %65 : vector<8x8xf32> to vector<1x8x8xf32>
    %70 = vector.shape_cast %66 : vector<8x8xf32> to vector<1x8x8xf32>
    %71 = vector.shape_cast %67 : vector<8x8xf32> to vector<1x8x8xf32>
    %72 = vector.shape_cast %68 : vector<8x8xf32> to vector<1x8x8xf32>
    %73 = tpu.concatenate %69, %70, %71, %72 in 0 : vector<1x8x8xf32>, vector<1x8x8xf32>, vector<1x8x8xf32>, vector<1x8x8xf32> -> vector<4x8x8xf32>
    "tpu.trace_start"() <{level = 10 : i32, message = "hqe,hke->hqk"}> : () -> ()
    %cst_21 = arith.constant dense<0.000000e+00> : vector<4x8x8xf32>
    %74 = tpu.matmul %55, %64, %cst_21 {dimension_numbers = #tpu.dot_dimension_numbers<[2], [2], [1], [1], [0, 0, 0, 1, 1, 1], [0], [0]>} : vector<4x8x8xf32>, vector<4x8x8xf32>, vector<4x8x8xf32> -> vector<4x8x8xf32>
    "tpu.trace_stop"() : () -> ()
    %cst_22 = arith.constant 0.353553385 : f32
    %75 = vector.broadcast %cst_22 : f32 to vector<4x8x8xf32>
    %76 = arith.mulf %74, %75 : vector<4x8x8xf32>
    %c0_23 = arith.constant 0 : index
    %c0_24 = arith.constant 0 : index
    %77 = vector.load %arg5[%c0_23, %c0_24] : memref<8x8xf32, #tpu.memory_space<vmem>>, vector<8x8xf32>
    %78 = vector.shape_cast %77 : vector<8x8xf32> to vector<1x8x8xf32>
    %79 = vector.broadcast %78 : vector<1x8x8xf32> to vector<4x8x8xf32>
    %80 = arith.addf %76, %79 : vector<4x8x8xf32>
    %cst_25 = arith.constant dense<0xFF800000> : vector<4x8xf32>
    %81 = vector.multi_reduction <maximumf>, %80, %cst_25 [2] : vector<4x8x8xf32> to vector<4x8xf32>
    %82 = vector.shape_cast %81 : vector<4x8xf32> to vector<4x8x1xf32>
    %83 = vector.broadcast %82 : vector<4x8x1xf32> to vector<4x8x8xf32>
    %84 = arith.subf %80, %83 : vector<4x8x8xf32>
    %85 = math.exp %84 : vector<4x8x8xf32>
    %cst_26 = arith.constant dense<0.000000e+00> : vector<4x8xf32>
    %86 = vector.multi_reduction <add>, %85, %cst_26 [2] : vector<4x8x8xf32> to vector<4x8xf32>
    %87 = vector.shape_cast %86 : vector<4x8xf32> to vector<4x8x1xf32>
    %88 = tpu.reciprocal %87 {approx = true} : vector<4x8x1xf32> -> vector<4x8x1xf32>
    %89 = vector.broadcast %88 : vector<4x8x1xf32> to vector<4x8x8xf32>
    %90 = arith.mulf %85, %89 : vector<4x8x8xf32>
    "tpu.trace_start"() <{level = 10 : i32, message = "hqk,hke->hqe"}> : () -> ()
    %cst_27 = arith.constant dense<0.000000e+00> : vector<4x8x8xf32>
    %91 = tpu.matmul %90, %73, %cst_27 {dimension_numbers = #tpu.dot_dimension_numbers<[2], [1], [1], [2], [0, 0, 0, 1, 1, 2], [0], [0]>} : vector<4x8x8xf32>, vector<4x8x8xf32>, vector<4x8x8xf32> -> vector<4x8x8xf32>
    "tpu.trace_stop"() : () -> ()
    %92 = vector.extract_strided_slice %91 {offsets = [0, 0, 0], sizes = [1, 8, 8], strides = [1, 1, 1]} : vector<4x8x8xf32> to vector<1x8x8xf32>
    %93 = vector.shape_cast %92 : vector<1x8x8xf32> to vector<8x8xf32>
    %94 = vector.extract_strided_slice %91 {offsets = [1, 0, 0], sizes = [1, 8, 8], strides = [1, 1, 1]} : vector<4x8x8xf32> to vector<1x8x8xf32>
    %95 = vector.shape_cast %94 : vector<1x8x8xf32> to vector<8x8xf32>
    %96 = vector.extract_strided_slice %91 {offsets = [2, 0, 0], sizes = [1, 8, 8], strides = [1, 1, 1]} : vector<4x8x8xf32> to vector<1x8x8xf32>
    %97 = vector.shape_cast %96 : vector<1x8x8xf32> to vector<8x8xf32>
    %98 = vector.extract_strided_slice %91 {offsets = [3, 0, 0], sizes = [1, 8, 8], strides = [1, 1, 1]} : vector<4x8x8xf32> to vector<1x8x8xf32>
    %99 = vector.shape_cast %98 : vector<1x8x8xf32> to vector<8x8xf32>
    %100 = tpu.concatenate %93, %95, %97, %99 in 1 : vector<8x8xf32>, vector<8x8xf32>, vector<8x8xf32>, vector<8x8xf32> -> vector<8x32xf32>
    %101 = arith.truncf %100 : vector<8x32xf32> to vector<8x32xbf16>
    %c0_28 = arith.constant 0 : index
    %c0_29 = arith.constant 0 : index
    %c0_30 = arith.constant 0 : index
    %102 = vector.load %arg10[%c0_28, %c0_29, %c0_30] : memref<1x32x32xbf16, #tpu.memory_space<vmem>>, vector<1x32x32xbf16>
    %103 = vector.shape_cast %102 : vector<1x32x32xbf16> to vector<32x32xbf16>
    %cst_31 = arith.constant dense<0.000000e+00> : vector<8x32xf32>
    %104 = tpu.matmul %101, %103, %cst_31 {dimension_numbers = #tpu.dot_dimension_numbers<[1], [0], [0], [1], [0, 0, 1, 1], [], []>} : vector<8x32xbf16>, vector<32x32xbf16>, vector<8x32xf32> -> vector<8x32xf32>
    %c0_32 = arith.constant 0 : index
    %c0_33 = arith.constant 0 : index
    %c0_34 = arith.constant 0 : index
    %105 = vector.load %arg11[%c0_32, %c0_33, %c0_34] : memref<1x1x32xf32, #tpu.memory_space<vmem>>, vector<1x1x32xf32>
    %106 = vector.shape_cast %105 : vector<1x1x32xf32> to vector<1x32xf32>
    %107 = vector.broadcast %106 : vector<1x32xf32> to vector<8x32xf32>
    %108 = arith.addf %104, %107 : vector<8x32xf32>
    %109 = arith.addf %9, %108 : vector<8x32xf32>
    %c0_35 = arith.constant 0 : index
    %c0_36 = arith.constant 0 : index
    %c0_37 = arith.constant 0 : index
    %110 = vector.load %arg12[%c0_35, %c0_36, %c0_37] : memref<1x1x32xf32, #tpu.memory_space<vmem>>, vector<1x1x32xf32>
    %111 = vector.shape_cast %110 : vector<1x1x32xf32> to vector<1x32xf32>
    %c0_38 = arith.constant 0 : index
    %c0_39 = arith.constant 0 : index
    %c0_40 = arith.constant 0 : index
    %112 = vector.load %arg13[%c0_38, %c0_39, %c0_40] : memref<1x1x32xf32, #tpu.memory_space<vmem>>, vector<1x1x32xf32>
    %113 = vector.shape_cast %112 : vector<1x1x32xf32> to vector<1x32xf32>
    %cst_41 = arith.constant dense<0.000000e+00> : vector<8xf32>
    %114 = vector.multi_reduction <add>, %109, %cst_41 [1] : vector<8x32xf32> to vector<8xf32>
    %115 = vector.shape_cast %114 : vector<8xf32> to vector<8x1xf32>
    %cst_42 = arith.constant 3.200000e+01 : f32
    %116 = vector.broadcast %cst_42 : f32 to vector<8x1xf32>
    %117 = arith.divf %115, %116 : vector<8x1xf32>
    %118 = vector.broadcast %117 : vector<8x1xf32> to vector<8x32xf32>
    %119 = arith.subf %109, %118 : vector<8x32xf32>
    %120 = arith.mulf %119, %119 : vector<8x32xf32>
    %cst_43 = arith.constant dense<0.000000e+00> : vector<8xf32>
    %121 = vector.multi_reduction <add>, %120, %cst_43 [1] : vector<8x32xf32> to vector<8xf32>
    %122 = vector.shape_cast %121 : vector<8xf32> to vector<8x1xf32>
    %cst_44 = arith.constant 3.200000e+01 : f32
    %123 = vector.broadcast %cst_44 : f32 to vector<8x1xf32>
    %124 = arith.divf %122, %123 : vector<8x1xf32>
    %125 = vector.broadcast %117 : vector<8x1xf32> to vector<8x32xf32>
    %126 = arith.subf %109, %125 : vector<8x32xf32>
    %cst_45 = arith.constant 9.99999974E-6 : f32
    %127 = vector.broadcast %cst_45 : f32 to vector<8x1xf32>
    %128 = arith.addf %124, %127 : vector<8x1xf32>
    %129 = math.rsqrt %128 : vector<8x1xf32>
    %130 = vector.broadcast %129 : vector<8x1xf32> to vector<8x32xf32>
    %131 = arith.mulf %126, %130 : vector<8x32xf32>
    %132 = vector.broadcast %111 : vector<1x32xf32> to vector<8x32xf32>
    %133 = arith.mulf %131, %132 : vector<8x32xf32>
    %134 = vector.broadcast %113 : vector<1x32xf32> to vector<8x32xf32>
    %135 = arith.addf %133, %134 : vector<8x32xf32>
    %136 = arith.truncf %135 : vector<8x32xf32> to vector<8x32xbf16>
    %c0_46 = arith.constant 0 : index
    %c0_47 = arith.constant 0 : index
    %c0_48 = arith.constant 0 : index
    %137 = vector.load %arg14[%c0_46, %c0_47, %c0_48] : memref<1x32x128xbf16, #tpu.memory_space<vmem>>, vector<1x32x128xbf16>
    %138 = vector.shape_cast %137 : vector<1x32x128xbf16> to vector<32x128xbf16>
    %cst_49 = arith.constant dense<0.000000e+00> : vector<8x128xf32>
    %139 = tpu.matmul %136, %138, %cst_49 {dimension_numbers = #tpu.dot_dimension_numbers<[1], [0], [0], [1], [0, 0, 1, 1], [], []>} : vector<8x32xbf16>, vector<32x128xbf16>, vector<8x128xf32> -> vector<8x128xf32>
    %c0_50 = arith.constant 0 : index
    %c0_51 = arith.constant 0 : index
    %c0_52 = arith.constant 0 : index
    %140 = vector.load %arg15[%c0_50, %c0_51, %c0_52] : memref<1x1x128xf32, #tpu.memory_space<vmem>>, vector<1x1x128xf32>
    %141 = vector.shape_cast %140 : vector<1x1x128xf32> to vector<1x128xf32>
    %142 = vector.broadcast %141 : vector<1x128xf32> to vector<8x128xf32>
    %143 = arith.addf %139, %142 : vector<8x128xf32>
    %cst_53 = arith.constant 1.702000e+00 : f32
    %144 = vector.broadcast %cst_53 : f32 to vector<8x128xf32>
    %145 = arith.mulf %144, %143 : vector<8x128xf32>
    %146 = arith.negf %145 : vector<8x128xf32>
    %147 = math.exp %146 : vector<8x128xf32>
    %cst_54 = arith.constant 1.000000e+00 : f32
    %148 = vector.broadcast %cst_54 : f32 to vector<8x128xf32>
    %149 = arith.addf %148, %147 : vector<8x128xf32>
    %150 = arith.divf %148, %149 : vector<8x128xf32>
    %151 = arith.mulf %143, %150 : vector<8x128xf32>
    %152 = arith.truncf %151 : vector<8x128xf32> to vector<8x128xbf16>
    %c0_55 = arith.constant 0 : index
    %c0_56 = arith.constant 0 : index
    %c0_57 = arith.constant 0 : index
    %153 = vector.load %arg16[%c0_55, %c0_56, %c0_57] : memref<1x128x32xbf16, #tpu.memory_space<vmem>>, vector<1x128x32xbf16>
    %154 = vector.shape_cast %153 : vector<1x128x32xbf16> to vector<128x32xbf16>
    %cst_58 = arith.constant dense<0.000000e+00> : vector<8x32xf32>
    %155 = tpu.matmul %152, %154, %cst_58 {dimension_numbers = #tpu.dot_dimension_numbers<[1], [0], [0], [1], [0, 0, 1, 1], [], []>} : vector<8x128xbf16>, vector<128x32xbf16>, vector<8x32xf32> -> vector<8x32xf32>
    %c0_59 = arith.constant 0 : index
    %c0_60 = arith.constant 0 : index
    %c0_61 = arith.constant 0 : index
    %156 = vector.load %arg17[%c0_59, %c0_60, %c0_61] : memref<1x1x32xf32, #tpu.memory_space<vmem>>, vector<1x1x32xf32>
    %157 = vector.shape_cast %156 : vector<1x1x32xf32> to vector<1x32xf32>
    %158 = vector.broadcast %157 : vector<1x32xf32> to vector<8x32xf32>
    %159 = arith.addf %155, %158 : vector<8x32xf32>
    %160 = arith.addf %109, %159 : vector<8x32xf32>
    %c0_62 = arith.constant 0 : index
    %c0_63 = arith.constant 0 : index
    %c0_64 = arith.constant 0 : index
    %161 = vector.load %arg18[%c0_62, %c0_63, %c0_64] : memref<1x8x32xf32, #tpu.memory_space<vmem>>, vector<1x8x32xf32>
    %162 = vector.shape_cast %161 : vector<1x8x32xf32> to vector<8x32xf32>
    %163 = vector.shape_cast %160 : vector<8x32xf32> to vector<1x8x32xf32>
    tpu.vector_store %arg18[%c0_62, %c0_63, %c0_64], %163 {strides = array<i32>} : memref<1x8x32xf32, #tpu.memory_space<vmem>>, vector<1x8x32xf32>,
    return
  }
  func.func @transform_0(%arg0: i32, %arg1: i32) -> (i32, i32, i32) {
    %c0_i32 = arith.constant 0 : i32
    %c0_i32_0 = arith.constant 0 : i32
    %c0_i32_1 = arith.constant 0 : i32
    return %arg0, %c0_i32, %c0_i32_0 : i32, i32, i32
  }
  func.func @transform_1(%arg0: i32, %arg1: i32) -> (i32, i32) {
    %c0_i32 = arith.constant 0 : i32
    %c0_i32_0 = arith.constant 0 : i32
    %c0_i32_1 = arith.constant 0 : i32
    return %c0_i32, %c0_i32_0 : i32, i32
  }
  func.func @transform_2(%arg0: i32, %arg1: i32) -> (i32, i32, i32) {
    %c1_i32 = arith.constant 1 : i32
    %0 = arith.subi %arg1, %c1_i32 : i32
    %c1_i32_0 = arith.constant 1 : i32
    %1 = arith.minsi %0, %c1_i32_0 : i32
    %c0_i32 = arith.constant 0 : i32
    %2 = arith.maxsi %1, %c0_i32 : i32
    %c0_i32_1 = arith.constant 0 : i32
    %c0_i32_2 = arith.constant 0 : i32
    %c0_i32_3 = arith.constant 0 : i32
    return %2, %c0_i32_1, %c0_i32_2 : i32, i32, i32
  }
  func.func @transform_3(%arg0: i32, %arg1: i32) -> (i32, i32) {
    %c0_i32 = arith.constant 0 : i32
    %c0_i32_0 = arith.constant 0 : i32
    %c0_i32_1 = arith.constant 0 : i32
    return %c0_i32, %c0_i32_0 : i32, i32
  }
  func.func @transform_4(%arg0: i32, %arg1: i32) -> (i32, i32, i32) {
    %c0_i32 = arith.constant 0 : i32
    %c0_i32_0 = arith.constant 0 : i32
    %c0_i32_1 = arith.constant 0 : i32
    return %arg1, %c0_i32, %c0_i32_0 : i32, i32, i32
  }
  func.func @transform_5(%arg0: i32, %arg1: i32) -> (i32, i32, i32) {
    %c0_i32 = arith.constant 0 : i32
    %c0_i32_0 = arith.constant 0 : i32
    %c0_i32_1 = arith.constant 0 : i32
    return %arg1, %c0_i32, %c0_i32_0 : i32, i32, i32
  }
  func.func @transform_6(%arg0: i32, %arg1: i32) -> (i32, i32, i32) {
    %c0_i32 = arith.constant 0 : i32
    %c0_i32_0 = arith.constant 0 : i32
    %c0_i32_1 = arith.constant 0 : i32
    return %arg1, %c0_i32, %c0_i32_0 : i32, i32, i32
  }
  func.func @transform_7(%arg0: i32, %arg1: i32) -> (i32, i32, i32) {
    %c0_i32 = arith.constant 0 : i32
    %c0_i32_0 = arith.constant 0 : i32
    %c0_i32_1 = arith.constant 0 : i32
    return %arg1, %c0_i32, %c0_i32_0 : i32, i32, i32
  }
  func.func @transform_8(%arg0: i32, %arg1: i32) -> (i32, i32, i32) {
    %c0_i32 = arith.constant 0 : i32
    %c0_i32_0 = arith.constant 0 : i32
    %c0_i32_1 = arith.constant 0 : i32
    return %arg1, %c0_i32, %c0_i32_0 : i32, i32, i32
  }
  func.func @transform_9(%arg0: i32, %arg1: i32) -> (i32, i32, i32) {
    %c0_i32 = arith.constant 0 : i32
    %c0_i32_0 = arith.constant 0 : i32
    %c0_i32_1 = arith.constant 0 : i32
    return %arg1, %c0_i32, %c0_i32_0 : i32, i32, i32
  }
  func.func @transform_10(%arg0: i32, %arg1: i32) -> (i32, i32, i32) {
    %c0_i32 = arith.constant 0 : i32
    %c0_i32_0 = arith.constant 0 : i32
    %c0_i32_1 = arith.constant 0 : i32
    return %arg1, %c0_i32, %c0_i32_0 : i32, i32, i32
  }
  func.func @transform_11(%arg0: i32, %arg1: i32) -> (i32, i32, i32) {
    %c0_i32 = arith.constant 0 : i32
    %c0_i32_0 = arith.constant 0 : i32
    %c0_i32_1 = arith.constant 0 : i32
    return %arg1, %c0_i32, %c0_i32_0 : i32, i32, i32
  }
  func.func @transform_12(%arg0: i32, %arg1: i32) -> (i32, i32, i32) {
    %c0_i32 = arith.constant 0 : i32
    %c0_i32_0 = arith.constant 0 : i32
    %c0_i32_1 = arith.constant 0 : i32
    return %arg1, %c0_i32, %c0_i32_0 : i32, i32, i32
  }
  func.func @transform_13(%arg0: i32, %arg1: i32) -> (i32, i32, i32) {
    %c0_i32 = arith.constant 0 : i32
    %c0_i32_0 = arith.constant 0 : i32
    %c0_i32_1 = arith.constant 0 : i32
    return %arg1, %c0_i32, %c0_i32_0 : i32, i32, i32
  }
  func.func @transform_14(%arg0: i32, %arg1: i32) -> (i32, i32, i32) {
    %c0_i32 = arith.constant 0 : i32
    %c0_i32_0 = arith.constant 0 : i32
    %c0_i32_1 = arith.constant 0 : i32
    return %arg1, %c0_i32, %c0_i32_0 : i32, i32, i32
  }
  func.func @transform_15(%arg0: i32, %arg1: i32) -> (i32, i32, i32) {
    %c0_i32 = arith.constant 0 : i32
    %c0_i32_0 = arith.constant 0 : i32
    %c0_i32_1 = arith.constant 0 : i32
    return %arg1, %c0_i32, %c0_i32_0 : i32, i32, i32
  }
  func.func @transform_16(%arg0: i32, %arg1: i32) -> (i32, i32, i32) {
    %c0_i32 = arith.constant 0 : i32
    %c0_i32_0 = arith.constant 0 : i32
    %c0_i32_1 = arith.constant 0 : i32
    return %arg0, %c0_i32, %c0_i32_0 : i32, i32, i32
  }
}

</mosaic_0001>

<llo_original>
// kernel: tpu_custom_call.1
$region0: #{tpu_custom_call.1}
  #allocation0 [shape = 'u32[]', space=smem, size = 0x4, offset = 0x4, fixed_abs, tag = 'smem constant byte address 0x4 - core index']
  #allocation1 [shape = 'u32[144,128]{1,0:T(1,128)}', space=vmem, size = 0x12000, scoped, tag = 'internal scratch']
  %s0 = inlined_call_operand.vmem [shape: f32[2,8,32], index: 0, kind: input, shape index: {}]
  %s1 = inlined_call_operand.vmem [shape: f32[8,32], index: 1, kind: input, shape index: {}]
  %s2 = inlined_call_operand.vmem [shape: f32[2,2,32], index: 2, kind: input, shape index: {}]
  %s3 = inlined_call_operand.vmem [shape: f32[8,8], index: 3, kind: input, shape index: {}]
  %s4 = inlined_call_operand.vmem [shape: f32[3,1,32], index: 4, kind: input, shape index: {}]
  %s5 = inlined_call_operand.vmem [shape: f32[3,1,32], index: 5, kind: input, shape index: {}]
  %s6 = inlined_call_operand.vmem [shape: bf16[3,32,96], index: 6, kind: input, shape index: {}]
  %s7 = inlined_call_operand.vmem [shape: f32[3,1,96], index: 7, kind: input, shape index: {}]
  %s8 = inlined_call_operand.vmem [shape: bf16[3,32,32], index: 8, kind: input, shape index: {}]
  %s9 = inlined_call_operand.vmem [shape: f32[3,1,32], index: 9, kind: input, shape index: {}]
  %s10 = inlined_call_operand.vmem [shape: f32[3,1,32], index: 10, kind: input, shape index: {}]
  %s11 = inlined_call_operand.vmem [shape: f32[3,1,32], index: 11, kind: input, shape index: {}]
  %s12 = inlined_call_operand.vmem [shape: bf16[3,32,128], index: 12, kind: input, shape index: {}]
  %s13 = inlined_call_operand.vmem [shape: f32[3,1,128], index: 13, kind: input, shape index: {}]
  %s14 = inlined_call_operand.vmem [shape: bf16[3,128,32], index: 14, kind: input, shape index: {}]
  %s15 = inlined_call_operand.vmem [shape: f32[3,1,32], index: 15, kind: input, shape index: {}]
  %s16 = inlined_call_operand.hbm [shape: f32[2,8,32], index: 16, kind: output, shape index: {}]
  %s17 = sld [smem:[#allocation0]]
  $region105: #{tpu_custom_call.1} parent=0
    _
  %s19 = ssub.s32 1, %s17
  %s20 = scalar_select 0, %s19, %s17
  $region1: #{tpu_custom_call.1} parent=0
    #allocation2 [shape = 'u8[8192]{0}', space=vmem, size = 0x2000, scoped, tag = 'output window, operand 0']
    #allocation3 [shape = 's32[2]{0}', space=sflag, size = 0x8, scoped, tag = 'scoped memory for tpu_custom_call.1']
    %21 = vsyncpa [#allocation3], 0
    %s22 = scalar_lea.sflag [#allocation3], 1
    %23 = vsyncpa %s22, 0
    loop: start=0, step=1, limit=8
    $region2: #{tpu_custom_call.1} parent=1 // loop_pre_header
      _
    $region3: #{tpu_custom_call.1} parent=1 // loop_header
      %s25 = sphi 0, %s29
      %p26 = scmp.ge.s32.totalorder %s25, 8
      %s32 = sphi 0, %s44
      %s33 = sphi 0, %s40
      %s34 = sphi 0, %s32
      %s35 = sphi 0, %s33
      %s36 = sphi 0, %s34
      %s37 = sphi 0, %s35
      %s47 = sphi 0, %s49
      %s50 = sphi 0, %s47
      %s51 = sphi 0, %s50
      %s67 = sphi 0, %s51
      %s71 = sphi 0, %s71
      %s73 = sphi 0, %s71
      %s74 = sphi 0, %s73
      %s88 = sphi 0, %s74
      %s104 = sphi 0, %s106
      %s107 = sphi 0, %s104
      %s108 = sphi 0, %s107
      %s124 = sphi 0, %s108
      %s128 = sphi 0, %s128
      %s130 = sphi 0, %s128
      %s131 = sphi 0, %s130
      %s145 = sphi 0, %s131
      %s151 = sphi 0, %s153
      %s154 = sphi 0, %s151
      %s155 = sphi 0, %s154
      %s171 = sphi 0, %s155
      %s177 = sphi 0, %s179
      %s180 = sphi 0, %s177
      %s181 = sphi 0, %s180
      %s197 = sphi 0, %s181
      %s203 = sphi 0, %s205
      %s206 = sphi 0, %s203
      %s207 = sphi 0, %s206
      %s223 = sphi 0, %s207
      %s229 = sphi 0, %s231
      %s232 = sphi 0, %s229
      %s233 = sphi 0, %s232
      %s249 = sphi 0, %s233
      %s255 = sphi 0, %s257
      %s258 = sphi 0, %s255
      %s259 = sphi 0, %s258
      %s275 = sphi 0, %s259
      %s281 = sphi 0, %s283
      %s284 = sphi 0, %s281
      %s285 = sphi 0, %s284
      %s301 = sphi 0, %s285
      %s307 = sphi 0, %s309
      %s310 = sphi 0, %s307
      %s311 = sphi 0, %s310
      %s327 = sphi 0, %s311
      %s333 = sphi 0, %s335
      %s336 = sphi 0, %s333
      %s337 = sphi 0, %s336
      %s353 = sphi 0, %s337
      %s359 = sphi 0, %s361
      %s362 = sphi 0, %s359
      %s363 = sphi 0, %s362
      %s379 = sphi 0, %s363
      %s385 = sphi 0, %s387
      %s388 = sphi 0, %s385
      %s389 = sphi 0, %s388
      %s405 = sphi 0, %s389
      %s411 = sphi 0, %s413
      %s414 = sphi 0, %s411
      %s415 = sphi 0, %s414
      %s431 = sphi 0, %s415
      %s437 = sphi 0, %s439
      %s440 = sphi 0, %s437
      %s441 = sphi 0, %s440
      %s457 = sphi 0, %s441
      %s463 = sphi 0, %s465
      %s466 = sphi 0, %s463
      %s467 = sphi 0, %s466
      %s483 = sphi 0, %s467
    $region4: #{tpu_custom_call.1} parent=1 // loop_header_branch
      %28 = sbr.rel (%p26) target = $region8
    $region5: #{tpu_custom_call.1} parent=1 // loop_body
      %s30 = ssub.s32 %s25, 1
      %s31 = ssub.s32 %s25, 2
      %s38 = sadd.s32 1, %s33
      %p39 = scmp.ge.s32.totalorder %s38, 3
      %s40 = scalar_select %p39, 0, %s38
      %s41 = sadd.s32 1, %s32
      %s42 = scalar_select %p39, %s41, %s32
      %p43 = scmp.ge.s32.totalorder %s42, 2
      %s44 = scalar_select %p43, 0, %s42
      %s45 = ssub.s32 %s32, %s44
      %p46 = scmp.eq.s32.totalorder %s45, 0
      %s48 = sadd.s32 %s47, 1
      %s49 = scalar_select %p46, %s47, %s48
      %p52 = pneg %p46
      %p53 = scmp.eq.s32.totalorder %s25, 5
      %p54 = por %p52, %p53
      %p55 = scmp.ne.s32.totalorder %s47, %s50
      %p56 = scmp.eq.s32.totalorder %s25, 0
      %p57 = por %p55, %p56
      %p58 = scmp.ne.s32.totalorder %s47, %s50
      %p59 = scmp.eq.s32.totalorder %s30, 5
      %p60 = por %p58, %p59
      %p61 = scmp.ne.s32.totalorder %s50, %s51
      %p62 = scmp.eq.s32.totalorder %s30, 0
      %p63 = por %p61, %p62
      %p64 = scmp.ne.s32.totalorder %s50, %s51
      %p65 = scmp.eq.s32.totalorder %s31, 5
      %p66 = por %p64, %p65
      %p68 = scmp.ne.s32.totalorder %s51, %s67
      %p69 = scmp.eq.s32.totalorder %s31, 0
      %p70 = por %p68, %p69
      %s72 = sadd.s32 %s71, 1
      %p75 = scmp.eq.s32.totalorder %s25, 5
      %p76 = scmp.ne.s32.totalorder %s71, %s73
      %p77 = scmp.eq.s32.totalorder %s25, 0
      %p78 = por %p76, %p77
      %p79 = scmp.ne.s32.totalorder %s71, %s73
      %p80 = scmp.eq.s32.totalorder %s30, 5
      %p81 = por %p79, %p80
      %p82 = scmp.ne.s32.totalorder %s73, %s74
      %p83 = scmp.eq.s32.totalorder %s30, 0
      %p84 = por %p82, %p83
      %p85 = scmp.ne.s32.totalorder %s73, %s74
      %p86 = scmp.eq.s32.totalorder %s31, 5
      %p87 = por %p85, %p86
      %p89 = scmp.ne.s32.totalorder %s74, %s88
      %p90 = scmp.eq.s32.totalorder %s31, 0
      %p91 = por %p89, %p90
      %s92 = ssub.s32 %s33, 1
      %p93 = scmp.lt.s32.totalorder %s92, 1
      %s94 = scalar_select %p93, %s92, 1
      %p95 = scmp.gt.s32.totalorder %s94, 0
      %s96 = scalar_select %p95, %s94, 0
      %s97 = ssub.s32 %s40, 1
      %p98 = scmp.lt.s32.totalorder %s97, 1
      %s99 = scalar_select %p98, %s97, 1
      %p100 = scmp.gt.s32.totalorder %s99, 0
      %s101 = scalar_select %p100, %s99, 0
      %s102 = ssub.s32 %s96, %s101
      %p103 = scmp.eq.s32.totalorder %s102, 0
      %s105 = sadd.s32 %s104, 1
      %s106 = scalar_select %p103, %s104, %s105
      %p109 = pneg %p103
      %p110 = scmp.eq.s32.totalorder %s25, 5
      %p111 = por %p109, %p110
      %p112 = scmp.ne.s32.totalorder %s104, %s107
      %p113 = scmp.eq.s32.totalorder %s25, 0
      %p114 = por %p112, %p113
      %p115 = scmp.ne.s32.totalorder %s104, %s107
      %p116 = scmp.eq.s32.totalorder %s30, 5
      %p117 = por %p115, %p116
      %p118 = scmp.ne.s32.totalorder %s107, %s108
      %p119 = scmp.eq.s32.totalorder %s30, 0
      %p120 = por %p118, %p119
      %p121 = scmp.ne.s32.totalorder %s107, %s108
      %p122 = scmp.eq.s32.totalorder %s31, 5
      %p123 = por %p121, %p122
      %p125 = scmp.ne.s32.totalorder %s108, %s124
      %p126 = scmp.eq.s32.totalorder %s31, 0
      %p127 = por %p125, %p126
      %s129 = sadd.s32 %s128, 1
      %p132 = scmp.eq.s32.totalorder %s25, 5
      %p133 = scmp.ne.s32.totalorder %s128, %s130
      %p134 = scmp.eq.s32.totalorder %s25, 0
      %p135 = por %p133, %p134
      %p136 = scmp.ne.s32.totalorder %s128, %s130
      %p137 = scmp.eq.s32.totalorder %s30, 5
      %p138 = por %p136, %p137
      %p139 = scmp.ne.s32.totalorder %s130, %s131
      %p140 = scmp.eq.s32.totalorder %s30, 0
      %p141 = por %p139, %p140
      %p142 = scmp.ne.s32.totalorder %s130, %s131
      %p143 = scmp.eq.s32.totalorder %s31, 5
      %p144 = por %p142, %p143
      %p146 = scmp.ne.s32.totalorder %s131, %s145
      %p147 = scmp.eq.s32.totalorder %s31, 0
      %p148 = por %p146, %p147
      %s149 = ssub.s32 %s33, %s40
      %p150 = scmp.eq.s32.totalorder %s149, 0
      %s152 = sadd.s32 %s151, 1
      %s153 = scalar_select %p150, %s151, %s152
      %p156 = pneg %p150
      %p157 = scmp.eq.s32.totalorder %s25, 5
      %p158 = por %p156, %p157
      %p159 = scmp.ne.s32.totalorder %s151, %s154
      %p160 = scmp.eq.s32.totalorder %s25, 0
      %p161 = por %p159, %p160
      %p162 = scmp.ne.s32.totalorder %s151, %s154
      %p163 = scmp.eq.s32.totalorder %s30, 5
      %p164 = por %p162, %p163
      %p165 = scmp.ne.s32.totalorder %s154, %s155
      %p166 = scmp.eq.s32.totalorder %s30, 0
      %p167 = por %p165, %p166
      %p168 = scmp.ne.s32.totalorder %s154, %s155
      %p169 = scmp.eq.s32.totalorder %s31, 5
      %p170 = por %p168, %p169
      %p172 = scmp.ne.s32.totalorder %s155, %s171
      %p173 = scmp.eq.s32.totalorder %s31, 0
      %p174 = por %p172, %p173
      %s175 = ssub.s32 %s33, %s40
      %p176 = scmp.eq.s32.totalorder %s175, 0
      %s178 = sadd.s32 %s177, 1
      %s179 = scalar_select %p176, %s177, %s178
      %p182 = pneg %p176
      %p183 = scmp.eq.s32.totalorder %s25, 5
      %p184 = por %p182, %p183
      %p185 = scmp.ne.s32.totalorder %s177, %s180
      %p186 = scmp.eq.s32.totalorder %s25, 0
      %p187 = por %p185, %p186
      %p188 = scmp.ne.s32.totalorder %s177, %s180
      %p189 = scmp.eq.s32.totalorder %s30, 5
      %p190 = por %p188, %p189
      %p191 = scmp.ne.s32.totalorder %s180, %s181
      %p192 = scmp.eq.s32.totalorder %s30, 0
      %p193 = por %p191, %p192
      %p194 = scmp.ne.s32.totalorder %s180, %s181
      %p195 = scmp.eq.s32.totalorder %s31, 5
      %p196 = por %p194, %p195
      %p198 = scmp.ne.s32.totalorder %s181, %s197
      %p199 = scmp.eq.s32.totalorder %s31, 0
      %p200 = por %p198, %p199
      %s201 = ssub.s32 %s33, %s40
      %p202 = scmp.eq.s32.totalorder %s201, 0
      %s204 = sadd.s32 %s203, 1
      %s205 = scalar_select %p202, %s203, %s204
      %p208 = pneg %p202
      %p209 = scmp.eq.s32.totalorder %s25, 5
      %p210 = por %p208, %p209
      %p211 = scmp.ne.s32.totalorder %s203, %s206
      %p212 = scmp.eq.s32.totalorder %s25, 0
      %p213 = por %p211, %p212
      %p214 = scmp.ne.s32.totalorder %s203, %s206
      %p215 = scmp.eq.s32.totalorder %s30, 5
      %p216 = por %p214, %p215
      %p217 = scmp.ne.s32.totalorder %s206, %s207
      %p218 = scmp.eq.s32.totalorder %s30, 0
      %p219 = por %p217, %p218
      %p220 = scmp.ne.s32.totalorder %s206, %s207
      %p221 = scmp.eq.s32.totalorder %s31, 5
      %p222 = por %p220, %p221
      %p224 = scmp.ne.s32.totalorder %s207, %s223
      %p225 = scmp.eq.s32.totalorder %s31, 0
      %p226 = por %p224, %p225
      %s227 = ssub.s32 %s33, %s40
      %p228 = scmp.eq.s32.totalorder %s227, 0
      %s230 = sadd.s32 %s229, 1
      %s231 = scalar_select %p228, %s229, %s230
      %p234 = pneg %p228
      %p235 = scmp.eq.s32.totalorder %s25, 5
      %p236 = por %p234, %p235
      %p237 = scmp.ne.s32.totalorder %s229, %s232
      %p238 = scmp.eq.s32.totalorder %s25, 0
      %p239 = por %p237, %p238
      %p240 = scmp.ne.s32.totalorder %s229, %s232
      %p241 = scmp.eq.s32.totalorder %s30, 5
      %p242 = por %p240, %p241
      %p243 = scmp.ne.s32.totalorder %s232, %s233
      %p244 = scmp.eq.s32.totalorder %s30, 0
      %p245 = por %p243, %p244
      %p246 = scmp.ne.s32.totalorder %s232, %s233
      %p247 = scmp.eq.s32.totalorder %s31, 5
      %p248 = por %p246, %p247
      %p250 = scmp.ne.s32.totalorder %s233, %s249
      %p251 = scmp.eq.s32.totalorder %s31, 0
      %p252 = por %p250, %p251
      %s253 = ssub.s32 %s33, %s40
      %p254 = scmp.eq.s32.totalorder %s253, 0
      %s256 = sadd.s32 %s255, 1
      %s257 = scalar_select %p254, %s255, %s256
      %p260 = pneg %p254
      %p261 = scmp.eq.s32.totalorder %s25, 5
      %p262 = por %p260, %p261
      %p263 = scmp.ne.s32.totalorder %s255, %s258
      %p264 = scmp.eq.s32.totalorder %s25, 0
      %p265 = por %p263, %p264
      %p266 = scmp.ne.s32.totalorder %s255, %s258
      %p267 = scmp.eq.s32.totalorder %s30, 5
      %p268 = por %p266, %p267
      %p269 = scmp.ne.s32.totalorder %s258, %s259
      %p270 = scmp.eq.s32.totalorder %s30, 0
      %p271 = por %p269, %p270
      %p272 = scmp.ne.s32.totalorder %s258, %s259
      %p273 = scmp.eq.s32.totalorder %s31, 5
      %p274 = por %p272, %p273
      %p276 = scmp.ne.s32.totalorder %s259, %s275
      %p277 = scmp.eq.s32.totalorder %s31, 0
      %p278 = por %p276, %p277
      %s279 = ssub.s32 %s33, %s40
      %p280 = scmp.eq.s32.totalorder %s279, 0
      %s282 = sadd.s32 %s281, 1
      %s283 = scalar_select %p280, %s281, %s282
      %p286 = pneg %p280
      %p287 = scmp.eq.s32.totalorder %s25, 5
      %p288 = por %p286, %p287
      %p289 = scmp.ne.s32.totalorder %s281, %s284
      %p290 = scmp.eq.s32.totalorder %s25, 0
      %p291 = por %p289, %p290
      %p292 = scmp.ne.s32.totalorder %s281, %s284
      %p293 = scmp.eq.s32.totalorder %s30, 5
      %p294 = por %p292, %p293
      %p295 = scmp.ne.s32.totalorder %s284, %s285
      %p296 = scmp.eq.s32.totalorder %s30, 0
      %p297 = por %p295, %p296
      %p298 = scmp.ne.s32.totalorder %s284, %s285
      %p299 = scmp.eq.s32.totalorder %s31, 5
      %p300 = por %p298, %p299
      %p302 = scmp.ne.s32.totalorder %s285, %s301
      %p303 = scmp.eq.s32.totalorder %s31, 0
      %p304 = por %p302, %p303
      %s305 = ssub.s32 %s33, %s40
      %p306 = scmp.eq.s32.totalorder %s305, 0
      %s308 = sadd.s32 %s307, 1
      %s309 = scalar_select %p306, %s307, %s308
      %p312 = pneg %p306
      %p313 = scmp.eq.s32.totalorder %s25, 5
      %p314 = por %p312, %p313
      %p315 = scmp.ne.s32.totalorder %s307, %s310
      %p316 = scmp.eq.s32.totalorder %s25, 0
      %p317 = por %p315, %p316
      %p318 = scmp.ne.s32.totalorder %s307, %s310
      %p319 = scmp.eq.s32.totalorder %s30, 5
      %p320 = por %p318, %p319
      %p321 = scmp.ne.s32.totalorder %s310, %s311
      %p322 = scmp.eq.s32.totalorder %s30, 0
      %p323 = por %p321, %p322
      %p324 = scmp.ne.s32.totalorder %s310, %s311
      %p325 = scmp.eq.s32.totalorder %s31, 5
      %p326 = por %p324, %p325
      %p328 = scmp.ne.s32.totalorder %s311, %s327
      %p329 = scmp.eq.s32.totalorder %s31, 0
      %p330 = por %p328, %p329
      %s331 = ssub.s32 %s33, %s40
      %p332 = scmp.eq.s32.totalorder %s331, 0
      %s334 = sadd.s32 %s333, 1
      %s335 = scalar_select %p332, %s333, %s334
      %p338 = pneg %p332
      %p339 = scmp.eq.s32.totalorder %s25, 5
      %p340 = por %p338, %p339
      %p341 = scmp.ne.s32.totalorder %s333, %s336
      %p342 = scmp.eq.s32.totalorder %s25, 0
      %p343 = por %p341, %p342
      %p344 = scmp.ne.s32.totalorder %s333, %s336
      %p345 = scmp.eq.s32.totalorder %s30, 5
      %p346 = por %p344, %p345
      %p347 = scmp.ne.s32.totalorder %s336, %s337
      %p348 = scmp.eq.s32.totalorder %s30, 0
      %p349 = por %p347, %p348
      %p350 = scmp.ne.s32.totalorder %s336, %s337
      %p351 = scmp.eq.s32.totalorder %s31, 5
      %p352 = por %p350, %p351
      %p354 = scmp.ne.s32.totalorder %s337, %s353
      %p355 = scmp.eq.s32.totalorder %s31, 0
      %p356 = por %p354, %p355
      %s357 = ssub.s32 %s33, %s40
      %p358 = scmp.eq.s32.totalorder %s357, 0
      %s360 = sadd.s32 %s359, 1
      %s361 = scalar_select %p358, %s359, %s360
      %p364 = pneg %p358
      %p365 = scmp.eq.s32.totalorder %s25, 5
      %p366 = por %p364, %p365
      %p367 = scmp.ne.s32.totalorder %s359, %s362
      %p368 = scmp.eq.s32.totalorder %s25, 0
      %p369 = por %p367, %p368
      %p370 = scmp.ne.s32.totalorder %s359, %s362
      %p371 = scmp.eq.s32.totalorder %s30, 5
      %p372 = por %p370, %p371
      %p373 = scmp.ne.s32.totalorder %s362, %s363
      %p374 = scmp.eq.s32.totalorder %s30, 0
      %p375 = por %p373, %p374
      %p376 = scmp.ne.s32.totalorder %s362, %s363
      %p377 = scmp.eq.s32.totalorder %s31, 5
      %p378 = por %p376, %p377
      %p380 = scmp.ne.s32.totalorder %s363, %s379
      %p381 = scmp.eq.s32.totalorder %s31, 0
      %p382 = por %p380, %p381
      %s383 = ssub.s32 %s33, %s40
      %p384 = scmp.eq.s32.totalorder %s383, 0
      %s386 = sadd.s32 %s385, 1
      %s387 = scalar_select %p384, %s385, %s386
      %p390 = pneg %p384
      %p391 = scmp.eq.s32.totalorder %s25, 5
      %p392 = por %p390, %p391
      %p393 = scmp.ne.s32.totalorder %s385, %s388
      %p394 = scmp.eq.s32.totalorder %s25, 0
      %p395 = por %p393, %p394
      %p396 = scmp.ne.s32.totalorder %s385, %s388
      %p397 = scmp.eq.s32.totalorder %s30, 5
      %p398 = por %p396, %p397
      %p399 = scmp.ne.s32.totalorder %s388, %s389
      %p400 = scmp.eq.s32.totalorder %s30, 0
      %p401 = por %p399, %p400
      %p402 = scmp.ne.s32.totalorder %s388, %s389
      %p403 = scmp.eq.s32.totalorder %s31, 5
      %p404 = por %p402, %p403
      %p406 = scmp.ne.s32.totalorder %s389, %s405
      %p407 = scmp.eq.s32.totalorder %s31, 0
      %p408 = por %p406, %p407
      %s409 = ssub.s32 %s33, %s40
      %p410 = scmp.eq.s32.totalorder %s409, 0
      %s412 = sadd.s32 %s411, 1
      %s413 = scalar_select %p410, %s411, %s412
      %p416 = pneg %p410
      %p417 = scmp.eq.s32.totalorder %s25, 5
      %p418 = por %p416, %p417
      %p419 = scmp.ne.s32.totalorder %s411, %s414
      %p420 = scmp.eq.s32.totalorder %s25, 0
      %p421 = por %p419, %p420
      %p422 = scmp.ne.s32.totalorder %s411, %s414
      %p423 = scmp.eq.s32.totalorder %s30, 5
      %p424 = por %p422, %p423
      %p425 = scmp.ne.s32.totalorder %s414, %s415
      %p426 = scmp.eq.s32.totalorder %s30, 0
      %p427 = por %p425, %p426
      %p428 = scmp.ne.s32.totalorder %s414, %s415
      %p429 = scmp.eq.s32.totalorder %s31, 5
      %p430 = por %p428, %p429
      %p432 = scmp.ne.s32.totalorder %s415, %s431
      %p433 = scmp.eq.s32.totalorder %s31, 0
      %p434 = por %p432, %p433
      %s435 = ssub.s32 %s33, %s40
      %p436 = scmp.eq.s32.totalorder %s435, 0
      %s438 = sadd.s32 %s437, 1
      %s439 = scalar_select %p436, %s437, %s438
      %p442 = pneg %p436
      %p443 = scmp.eq.s32.totalorder %s25, 5
      %p444 = por %p442, %p443
      %p445 = scmp.ne.s32.totalorder %s437, %s440
      %p446 = scmp.eq.s32.totalorder %s25, 0
      %p447 = por %p445, %p446
      %p448 = scmp.ne.s32.totalorder %s437, %s440
      %p449 = scmp.eq.s32.totalorder %s30, 5
      %p450 = por %p448, %p449
      %p451 = scmp.ne.s32.totalorder %s440, %s441
      %p452 = scmp.eq.s32.totalorder %s30, 0
      %p453 = por %p451, %p452
      %p454 = scmp.ne.s32.totalorder %s440, %s441
      %p455 = scmp.eq.s32.totalorder %s31, 5
      %p456 = por %p454, %p455
      %p458 = scmp.ne.s32.totalorder %s441, %s457
      %p459 = scmp.eq.s32.totalorder %s31, 0
      %p460 = por %p458, %p459
      %s461 = ssub.s32 %s32, %s44
      %p462 = scmp.eq.s32.totalorder %s461, 0
      %s464 = sadd.s32 %s463, 1
      %s465 = scalar_select %p462, %s463, %s464
      %p468 = pneg %p462
      %p469 = scmp.eq.s32.totalorder %s25, 5
      %p470 = por %p468, %p469
      %p471 = scmp.ne.s32.totalorder %s463, %s466
      %p472 = scmp.eq.s32.totalorder %s25, 0
      %p473 = por %p471, %p472
      %p474 = scmp.ne.s32.totalorder %s463, %s466
      %p475 = scmp.eq.s32.totalorder %s30, 5
      %p476 = por %p474, %p475
      %p477 = scmp.ne.s32.totalorder %s466, %s467
      %p478 = scmp.eq.s32.totalorder %s30, 0
      %p479 = por %p477, %p478
      %p480 = scmp.ne.s32.totalorder %s466, %s467
      %p481 = scmp.eq.s32.totalorder %s31, 5
      %p482 = por %p480, %p481
      %p484 = scmp.ne.s32.totalorder %s467, %s483
      %p485 = scmp.eq.s32.totalorder %s31, 0
      %p486 = por %p484, %p485
      %p487 = scmp.le.s32.totalorder 1, %s25
      %p488 = scmp.lt.s32.totalorder %s25, 7
      %p489 = pnand %p487, %p488
      %p490 = pneg %p489
      // Predicated region
      $region9: #{tpu_custom_call.1} parent=5 // pred_check
        _
      $region10: #{tpu_custom_call.1} parent=5 // pred_check_branch
        %492 = sbr.rel (%p489) target = $region12
      $region11: #{tpu_custom_call.1} parent=5 // pred_region
        %s493 = ssub.s32 %s25, 1
        // Predicated region
        $region13: #{tpu_custom_call.1} parent=11 // pred_check
          %p494 = pneg %p84
        $region14: #{tpu_custom_call.1} parent=11 // pred_check_branch
          %496 = sbr.rel (%p494) target = $region16
        $region15: #{tpu_custom_call.1} parent=11 // pred_region
          _
        $region16: #{tpu_custom_call.1} parent=11 // pred_fallthru
          _
        // Predicated region
        $region17: #{tpu_custom_call.1} parent=11 // pred_check
          %p497 = pneg %p141
        $region18: #{tpu_custom_call.1} parent=11 // pred_check_branch
          %499 = sbr.rel (%p497) target = $region20
        $region19: #{tpu_custom_call.1} parent=11 // pred_region
          _
        $region20: #{tpu_custom_call.1} parent=11 // pred_fallthru
          _
      $region12: #{tpu_custom_call.1} parent=5 // pred_fallthru
        _
      %p500 = scmp.lt.s32.totalorder %s25, 6
      // Predicated region
      $region21: #{tpu_custom_call.1} parent=5 // pred_check
        %p501 = pneg %p500
      $region22: #{tpu_custom_call.1} parent=5 // pred_check_branch
        %503 = sbr.rel (%p501) target = $region24
      $region23: #{tpu_custom_call.1} parent=5 // pred_region
        // Predicated region
        $region25: #{tpu_custom_call.1} parent=23 // pred_check
          %p504 = pneg %p57
        $region26: #{tpu_custom_call.1} parent=23 // pred_check_branch
          %506 = sbr.rel (%p504) target = $region28
        $region27: #{tpu_custom_call.1} parent=23 // pred_region
          %p507 = scmp.lt.s32.totalorder %s32, 1
          %s508 = scalar_select %p507, %s32, 1
          %s509 = smul.addr %s508, 8
          %s510 = scalar_lea.vmem %s0, %s509
        $region28: #{tpu_custom_call.1} parent=23 // pred_fallthru
          _
        // Predicated region
        $region29: #{tpu_custom_call.1} parent=23 // pred_check
          %p511 = pneg %p114
        $region30: #{tpu_custom_call.1} parent=23 // pred_check_branch
          %513 = sbr.rel (%p511) target = $region32
        $region31: #{tpu_custom_call.1} parent=23 // pred_region
          %s514 = ssub.s32 %s33, 1
          %p515 = scmp.lt.s32.totalorder %s514, 1
          %s516 = scalar_select %p515, %s514, 1
          %p517 = scmp.gt.s32.totalorder %s516, 0
          %s518 = scalar_select %p517, %s516, 0
          %p519 = scmp.lt.s32.totalorder %s518, 1
          %s520 = scalar_select %p519, %s518, 1
          %s521 = smul.addr %s520, 2
          %s522 = scalar_lea.vmem %s2, %s521
          %s523 = ssub.s32 %s33, 1
          %p524 = scmp.lt.s32.totalorder %s523, 1
          %s525 = scalar_select %p524, %s523, 1
          %p526 = scmp.gt.s32.totalorder %s525, 0
          %s527 = scalar_select %p526, %s525, 0
        $region32: #{tpu_custom_call.1} parent=23 // pred_fallthru
          _
        // Predicated region
        $region33: #{tpu_custom_call.1} parent=23 // pred_check
          %p528 = pneg %p161
        $region34: #{tpu_custom_call.1} parent=23 // pred_check_branch
          %530 = sbr.rel (%p528) target = $region36
        $region35: #{tpu_custom_call.1} parent=23 // pred_region
          %p531 = scmp.lt.s32.totalorder %s33, 2
          %s532 = scalar_select %p531, %s33, 2
          %s533 = scalar_lea.vmem %s4, %s532
        $region36: #{tpu_custom_call.1} parent=23 // pred_fallthru
          _
        // Predicated region
        $region37: #{tpu_custom_call.1} parent=23 // pred_check
          %p534 = pneg %p187
        $region38: #{tpu_custom_call.1} parent=23 // pred_check_branch
          %536 = sbr.rel (%p534) target = $region40
        $region39: #{tpu_custom_call.1} parent=23 // pred_region
          %p537 = scmp.lt.s32.totalorder %s33, 2
          %s538 = scalar_select %p537, %s33, 2
          %s539 = scalar_lea.vmem %s5, %s538
        $region40: #{tpu_custom_call.1} parent=23 // pred_fallthru
          _
        // Predicated region
        $region41: #{tpu_custom_call.1} parent=23 // pred_check
          %p540 = pneg %p213
        $region42: #{tpu_custom_call.1} parent=23 // pred_check_branch
          %542 = sbr.rel (%p540) target = $region44
        $region43: #{tpu_custom_call.1} parent=23 // pred_region
          %p543 = scmp.lt.s32.totalorder %s33, 2
          %s544 = scalar_select %p543, %s33, 2
          %s545 = smul.addr %s544, 4
          %s546 = smul.addr %s545, 4
          %s547 = scalar_lea.vmem %s6, %s546
        $region44: #{tpu_custom_call.1} parent=23 // pred_fallthru
          _
        // Predicated region
        $region45: #{tpu_custom_call.1} parent=23 // pred_check
          %p548 = pneg %p239
        $region46: #{tpu_custom_call.1} parent=23 // pred_check_branch
          %550 = sbr.rel (%p548) target = $region48
        $region47: #{tpu_custom_call.1} parent=23 // pred_region
          %p551 = scmp.lt.s32.totalorder %s33, 2
          %s552 = scalar_select %p551, %s33, 2
          %s553 = scalar_lea.vmem %s7, %s552
        $region48: #{tpu_custom_call.1} parent=23 // pred_fallthru
          _
        // Predicated region
        $region49: #{tpu_custom_call.1} parent=23 // pred_check
          %p554 = pneg %p265
        $region50: #{tpu_custom_call.1} parent=23 // pred_check_branch
          %556 = sbr.rel (%p554) target = $region52
        $region51: #{tpu_custom_call.1} parent=23 // pred_region
          %p557 = scmp.lt.s32.totalorder %s33, 2
          %s558 = scalar_select %p557, %s33, 2
          %s559 = smul.addr %s558, 4
          %s560 = smul.addr %s559, 4
          %s561 = scalar_lea.vmem %s8, %s560
        $region52: #{tpu_custom_call.1} parent=23 // pred_fallthru
          _
        // Predicated region
        $region53: #{tpu_custom_call.1} parent=23 // pred_check
          %p562 = pneg %p291
        $region54: #{tpu_custom_call.1} parent=23 // pred_check_branch
          %564 = sbr.rel (%p562) target = $region56
        $region55: #{tpu_custom_call.1} parent=23 // pred_region
          %p565 = scmp.lt.s32.totalorder %s33, 2
          %s566 = scalar_select %p565, %s33, 2
          %s567 = scalar_lea.vmem %s9, %s566
        $region56: #{tpu_custom_call.1} parent=23 // pred_fallthru
          _
        // Predicated region
        $region57: #{tpu_custom_call.1} parent=23 // pred_check
          %p568 = pneg %p317
        $region58: #{tpu_custom_call.1} parent=23 // pred_check_branch
          %570 = sbr.rel (%p568) target = $region60
        $region59: #{tpu_custom_call.1} parent=23 // pred_region
          %p571 = scmp.lt.s32.totalorder %s33, 2
          %s572 = scalar_select %p571, %s33, 2
          %s573 = scalar_lea.vmem %s10, %s572
        $region60: #{tpu_custom_call.1} parent=23 // pred_fallthru
          _
        // Predicated region
        $region61: #{tpu_custom_call.1} parent=23 // pred_check
          %p574 = pneg %p343
        $region62: #{tpu_custom_call.1} parent=23 // pred_check_branch
          %576 = sbr.rel (%p574) target = $region64
        $region63: #{tpu_custom_call.1} parent=23 // pred_region
          %p577 = scmp.lt.s32.totalorder %s33, 2
          %s578 = scalar_select %p577, %s33, 2
          %s579 = scalar_lea.vmem %s11, %s578
        $region64: #{tpu_custom_call.1} parent=23 // pred_fallthru
          _
        // Predicated region
        $region65: #{tpu_custom_call.1} parent=23 // pred_check
          %p580 = pneg %p369
        $region66: #{tpu_custom_call.1} parent=23 // pred_check_branch
          %582 = sbr.rel (%p580) target = $region68
        $region67: #{tpu_custom_call.1} parent=23 // pred_region
          %p583 = scmp.lt.s32.totalorder %s33, 2
          %s584 = scalar_select %p583, %s33, 2
          %s585 = smul.addr %s584, 4
          %s586 = smul.addr %s585, 4
          %s587 = scalar_lea.vmem %s12, %s586
        $region68: #{tpu_custom_call.1} parent=23 // pred_fallthru
          _
        // Predicated region
        $region69: #{tpu_custom_call.1} parent=23 // pred_check
          %p588 = pneg %p395
        $region70: #{tpu_custom_call.1} parent=23 // pred_check_branch
          %590 = sbr.rel (%p588) target = $region72
        $region71: #{tpu_custom_call.1} parent=23 // pred_region
          %p591 = scmp.lt.s32.totalorder %s33, 2
          %s592 = scalar_select %p591, %s33, 2
          %s593 = scalar_lea.vmem %s13, %s592
        $region72: #{tpu_custom_call.1} parent=23 // pred_fallthru
          _
        // Predicated region
        $region73: #{tpu_custom_call.1} parent=23 // pred_check
          %p594 = pneg %p421
        $region74: #{tpu_custom_call.1} parent=23 // pred_check_branch
          %596 = sbr.rel (%p594) target = $region76
        $region75: #{tpu_custom_call.1} parent=23 // pred_region
          %p597 = scmp.lt.s32.totalorder %s33, 2
          %s598 = scalar_select %p597, %s33, 2
          %s599 = smul.addr %s598, 16
          %s600 = smul.addr %s599, 4
          %s601 = scalar_lea.vmem %s14, %s600
        $region76: #{tpu_custom_call.1} parent=23 // pred_fallthru
          _
        // Predicated region
        $region77: #{tpu_custom_call.1} parent=23 // pred_check
          %p602 = pneg %p447
        $region78: #{tpu_custom_call.1} parent=23 // pred_check_branch
          %604 = sbr.rel (%p602) target = $region80
        $region79: #{tpu_custom_call.1} parent=23 // pred_region
          %p605 = scmp.lt.s32.totalorder %s33, 2
          %s606 = scalar_select %p605, %s33, 2
          %s607 = scalar_lea.vmem %s15, %s606
        $region80: #{tpu_custom_call.1} parent=23 // pred_fallthru
          _
      $region24: #{tpu_custom_call.1} parent=5 // pred_fallthru
        _
      %p608 = scmp.le.s32.totalorder 1, %s25
      %p609 = scmp.lt.s32.totalorder %s25, 7
      %p610 = pnand %p608, %p609
      %p611 = pneg %p610
      // Predicated region
      $region81: #{tpu_custom_call.1} parent=5 // pred_check
        _
      $region82: #{tpu_custom_call.1} parent=5 // pred_check_branch
        %613 = sbr.rel (%p610) target = $region84
      $region83: #{tpu_custom_call.1} parent=5 // pred_region
        %s614 = ssub.s32 %s25, 1
        %p615 = scmp.lt.s32.totalorder %s34, 1
        %s616 = scalar_select %p615, %s34, 1
        %s617 = smul.addr %s616, 8
        %s618 = scalar_lea.vmem %s0, %s617
        %p619 = pneg %p63
        %p620 = pneg %p60
        %p621 = pneg %p84
        %p622 = pneg %p81
        %s623 = ssub.s32 %s35, 1
        %p624 = scmp.lt.s32.totalorder %s623, 1
        %s625 = scalar_select %p624, %s623, 1
        %p626 = scmp.gt.s32.totalorder %s625, 0
        %s627 = scalar_select %p626, %s625, 0
        %p628 = scmp.lt.s32.totalorder %s627, 1
        %s629 = scalar_select %p628, %s627, 1
        %s630 = smul.addr %s629, 2
        %s631 = scalar_lea.vmem %s2, %s630
        %p632 = pneg %p120
        %p633 = pneg %p117
        %p634 = pneg %p141
        %p635 = pneg %p138
        %p636 = scmp.lt.s32.totalorder %s35, 2
        %s637 = scalar_select %p636, %s35, 2
        %s638 = scalar_lea.vmem %s4, %s637
        %p639 = pneg %p167
        %p640 = pneg %p164
        %p641 = scmp.lt.s32.totalorder %s35, 2
        %s642 = scalar_select %p641, %s35, 2
        %s643 = scalar_lea.vmem %s5, %s642
        %p644 = pneg %p193
        %p645 = pneg %p190
        %p646 = scmp.lt.s32.totalorder %s35, 2
        %s647 = scalar_select %p646, %s35, 2
        %s648 = smul.addr %s647, 4
        %s649 = smul.addr %s648, 4
        %s650 = scalar_lea.vmem %s6, %s649
        %p651 = pneg %p219
        %p652 = pneg %p216
        %p653 = scmp.lt.s32.totalorder %s35, 2
        %s654 = scalar_select %p653, %s35, 2
        %s655 = scalar_lea.vmem %s7, %s654
        %p656 = pneg %p245
        %p657 = pneg %p242
        %p658 = scmp.lt.s32.totalorder %s35, 2
        %s659 = scalar_select %p658, %s35, 2
        %s660 = smul.addr %s659, 4
        %s661 = smul.addr %s660, 4
        %s662 = scalar_lea.vmem %s8, %s661
        %p663 = pneg %p271
        %p664 = pneg %p268
        %p665 = scmp.lt.s32.totalorder %s35, 2
        %s666 = scalar_select %p665, %s35, 2
        %s667 = scalar_lea.vmem %s9, %s666
        %p668 = pneg %p297
        %p669 = pneg %p294
        %p670 = scmp.lt.s32.totalorder %s35, 2
        %s671 = scalar_select %p670, %s35, 2
        %s672 = scalar_lea.vmem %s10, %s671
        %p673 = pneg %p323
        %p674 = pneg %p320
        %p675 = scmp.lt.s32.totalorder %s35, 2
        %s676 = scalar_select %p675, %s35, 2
        %s677 = scalar_lea.vmem %s11, %s676
        %p678 = pneg %p349
        %p679 = pneg %p346
        %p680 = scmp.lt.s32.totalorder %s35, 2
        %s681 = scalar_select %p680, %s35, 2
        %s682 = smul.addr %s681, 4
        %s683 = smul.addr %s682, 4
        %s684 = scalar_lea.vmem %s12, %s683
        %p685 = pneg %p375
        %p686 = pneg %p372
        %p687 = scmp.lt.s32.totalorder %s35, 2
        %s688 = scalar_select %p687, %s35, 2
        %s689 = scalar_lea.vmem %s13, %s688
        %p690 = pneg %p401
        %p691 = pneg %p398
        %p692 = scmp.lt.s32.totalorder %s35, 2
        %s693 = scalar_select %p692, %s35, 2
        %s694 = smul.addr %s693, 16
        %s695 = smul.addr %s694, 4
        %s696 = scalar_lea.vmem %s14, %s695
        %p697 = pneg %p427
        %p698 = pneg %p424
        %p699 = scmp.lt.s32.totalorder %s35, 2
        %s700 = scalar_select %p699, %s35, 2
        %s701 = scalar_lea.vmem %s15, %s700
        %p702 = pneg %p453
        %p703 = pneg %p450
        %p704 = pneg %p479
        %p705 = pneg %p476
        %s706 = sand.u32 %s466, 1
        %s707 = scalar_lea.sflag [#allocation3], %s706
        %s708 = sand.u32 %s466, 1
        %s709 = smul.addr %s708, 8
        %s710 = scalar_lea.vmem [#allocation2], %s709
        %p711 = scmp.lt.s32.totalorder %s34, 1
        %s712 = scalar_select %p711, %s34, 1
        %s713 = smul.addr %s712, 8
        %s714 = scalar_lea.vmem %s0, %s713
        %s715 = ssub.s32 %s35, 1
        %p716 = scmp.lt.s32.totalorder %s715, 1
        %s717 = scalar_select %p716, %s715, 1
        %p718 = scmp.gt.s32.totalorder %s717, 0
        %s719 = scalar_select %p718, %s717, 0
        %p720 = scmp.lt.s32.totalorder %s719, 1
        %s721 = scalar_select %p720, %s719, 1
        %s722 = smul.addr %s721, 2
        %s723 = scalar_lea.vmem %s2, %s722
        %s724 = ssub.s32 %s35, 1
        %p725 = scmp.lt.s32.totalorder %s724, 1
        %s726 = scalar_select %p725, %s724, 1
        %p727 = scmp.gt.s32.totalorder %s726, 0
        %s728 = scalar_select %p727, %s726, 0
        %p729 = scmp.lt.s32.totalorder %s35, 2
        %s730 = scalar_select %p729, %s35, 2
        %s731 = scalar_lea.vmem %s4, %s730
        %p732 = scmp.lt.s32.totalorder %s35, 2
        %s733 = scalar_select %p732, %s35, 2
        %s734 = scalar_lea.vmem %s5, %s733
        %p735 = scmp.lt.s32.totalorder %s35, 2
        %s736 = scalar_select %p735, %s35, 2
        %s737 = smul.addr %s736, 4
        %s738 = smul.addr %s737, 4
        %s739 = scalar_lea.vmem %s6, %s738
        %p740 = scmp.lt.s32.totalorder %s35, 2
        %s741 = scalar_select %p740, %s35, 2
        %s742 = scalar_lea.vmem %s7, %s741
        %p743 = scmp.lt.s32.totalorder %s35, 2
        %s744 = scalar_select %p743, %s35, 2
        %s745 = smul.addr %s744, 4
        %s746 = smul.addr %s745, 4
        %s747 = scalar_lea.vmem %s8, %s746
        %p748 = scmp.lt.s32.totalorder %s35, 2
        %s749 = scalar_select %p748, %s35, 2
        %s750 = scalar_lea.vmem %s9, %s749
        %p751 = scmp.lt.s32.totalorder %s35, 2
        %s752 = scalar_select %p751, %s35, 2
        %s753 = scalar_lea.vmem %s10, %s752
        %p754 = scmp.lt.s32.totalorder %s35, 2
        %s755 = scalar_select %p754, %s35, 2
        %s756 = scalar_lea.vmem %s11, %s755
        %p757 = scmp.lt.s32.totalorder %s35, 2
        %s758 = scalar_select %p757, %s35, 2
        %s759 = smul.addr %s758, 4
        %s760 = smul.addr %s759, 4
        %s761 = scalar_lea.vmem %s12, %s760
        %p762 = scmp.lt.s32.totalorder %s35, 2
        %s763 = scalar_select %p762, %s35, 2
        %s764 = scalar_lea.vmem %s13, %s763
        %p765 = scmp.lt.s32.totalorder %s35, 2
        %s766 = scalar_select %p765, %s35, 2
        %s767 = smul.addr %s766, 16
        %s768 = smul.addr %s767, 4
        %s769 = scalar_lea.vmem %s14, %s768
        %p770 = scmp.lt.s32.totalorder %s35, 2
        %s771 = scalar_select %p770, %s35, 2
        %s772 = scalar_lea.vmem %s15, %s771
        %p774 = scmp.eq.s32.totalorder %s35, 0
        // Predicated region
        $region85: #{tpu_custom_call.1} parent=83 // pred_check
          %p775 = pneg %p774
        $region86: #{tpu_custom_call.1} parent=83 // pred_check_branch
          %777 = sbr.rel (%p775) target = $region88
        $region87: #{tpu_custom_call.1} parent=83 // pred_region
          %v778 = vld [vmem:[%s714] sm:$0xff]
          %v779 = vld [vmem:[%s1] sm:$0xff]
          %v780 = vadd.f32 %v778, %v779
          %vm781 = vcmask 261120
          %782 = vst.msk [vmem:[%s710] sm:$0xff] %vm781, %v780
        $region88: #{tpu_custom_call.1} parent=83 // pred_fallthru
          _
        %p783 = scmp.ge.s32.totalorder %s35, 1
        %p784 = scmp.le.s32.totalorder %s35, 2
        %p785 = pnand %p783, %p784
        %p786 = pneg %p785
        // Predicated region
        $region89: #{tpu_custom_call.1} parent=83 // pred_check
          _
        $region90: #{tpu_custom_call.1} parent=83 // pred_check_branch
          %788 = sbr.rel (%p785) target = $region92
        $region91: #{tpu_custom_call.1} parent=83 // pred_region
          %v789 = vld [vmem:[%s710] sm:$0xff]
          %v790 = vld [vmem:[%s723] sm:$0x3]
          %v792 = vrot.slane %v790, 7
          %vm794 = vcmask 1040384
          %v795 = vsel %vm794, %v789, %v792
          %vm796 = vcmask 1042432
          %v797 = vsel %vm796, %v795, %v789
          %vm798 = vcmask 261120
          %799 = vst.msk [vmem:[%s710] sm:$0xff] %vm798, %v797
        $region92: #{tpu_custom_call.1} parent=83 // pred_fallthru
          _
        %v800 = vld [vmem:[%s710] sm:$0xff]
        %v801 = vld [vmem:[%s731] sm:$0x1]
        %v802 = vld [vmem:[%s734] sm:$0x1]
        %vm803 = vcmask 261120
        %v804 = vsel %vm803, %v800, 0.0
        %805 = vadd.xlane.f32.xlu0 %v804
        %v806 = vpop.xlane.xlu0 %805
        %v807 = vrcp.pop 32.0
        %v808 = vmul.f32 %v806, %v807
        %v809 = vsub.f32 %v800, %v808
        %v810 = vmul.f32 %v809, %v809
        %v811 = vsel %vm803, %v810, 0.0
        %812 = vadd.xlane.f32.xlu0 %v811
        %v813 = vpop.xlane.xlu0 %812
        %v814 = vmul.f32 %v813, %v807
        %v815 = vadd.f32 %v814, 1e-05
        %v816 = vrsqrt.pop %v815
        %v817 = vmul.f32 %v809, %v816
        %v819 = vlaneseq
        %v820 = vshrl.u32 %v819, 7
        %v821 = vsub.s32 0, %v820
        %v822 = vrot.slane %v801, %v821
        %v824 = vmul.f32 %v817, %v822
        %v826 = vlaneseq
        %v827 = vshrl.u32 %v826, 7
        %v828 = vsub.s32 0, %v827
        %v829 = vrot.slane %v802, %v828
        %v831 = vadd.f32 %v824, %v829
        %v832 = vpack.c.bf16 %v831, %v831
        %v833 = vld [vmem:[%s739] sm:$0xf]
        %v834 = vld [vmem:[%s739 + $0x4] sm:$0xf]
        %v835 = vld [vmem:[%s739 + $0x8] sm:$0xf]
        %v836 = vld [vmem:[%s739 + $0xc] sm:$0xf]
        %v837 = vld [vmem:[%s742] sm:$0x1]
        %v839 = vlaneseq
        %v840 = vshrl.u32 %v839, 7
        %v841 = vsub.s32 0, %v840
        %v842 = vrot.slane %v837, %v841
        %v848 = vunpack.c.l.b16 %v833
        %v849 = vunpack.c.l.b16 %v834
        %v850 = vunpack.c.l.b16 %v835
        %v851 = vunpack.c.l.b16 %v836
        %v852 = vpack.c.b16 %v849, %v848
        %v853 = vpack.c.b16 %v851, %v850
        %v857 = vsel %vm803, %v832, 0
        %859 = vmatprep.subr.bf16.mxu0 0
        %860 = vmatpush1.bf16.msra.mxu0 %v852
        %861 = vmatprep.subr.bf16.mxu0 0
        %862 = vmatpush1.bf16.msra.mxu0 %v853
        %863 = vmatprep.subr.bf16.mxu0 0
        %864 = vmatpush1.bf16.msra.mxu0 0
        %865 = vmatprep.subr.bf16.mxu0 0
        %866 = vmatpush1.bf16.msra.mxu0 0
        %867 = vmatprep.subr.bf16.mxu0 0
        %868 = vmatpush1.bf16.msra.mxu0 0
        %869 = vmatprep.subr.bf16.mxu0 0
        %870 = vmatpush1.bf16.msra.mxu0 0
        %871 = vmatprep.subr.bf16.mxu0 0
        %872 = vmatpush1.bf16.msra.mxu0 0
        %873 = vmatprep.subr.bf16.mxu0 0
        %874 = vmatpush1.bf16.msra.mxu0 0
        %875 = vmatprep.subr.bf16.mxu0 0
        %876 = vmatpush1.bf16.msra.mxu0 0
        %877 = vmatprep.subr.bf16.mxu0 0
        %878 = vmatpush1.bf16.msra.mxu0 0
        %879 = vmatprep.subr.bf16.mxu0 0
        %880 = vmatpush1.bf16.msra.mxu0 0
        %881 = vmatprep.subr.bf16.mxu0 0
        %882 = vmatpush1.bf16.msra.mxu0 0
        %883 = vmatprep.subr.bf16.mxu0 0
        %884 = vmatpush1.bf16.msra.mxu0 0
        %885 = vmatprep.subr.bf16.mxu0 0
        %886 = vmatpush1.bf16.msra.mxu0 0
        %887 = vmatprep.subr.bf16.mxu0 0
        %888 = vmatpush1.bf16.msra.mxu0 0
        %889 = vmatprep.subr.bf16.mxu0 0
        %890 = vmatpush1.bf16.msra.mxu0 0
        %891 = vmatprep.mubr.bf16.mxu0 0
        %892 = vmatmul.mubr.bf16.gmra.mrb[0].mxu0 %v857
        %v893 = vpop.f32.mrb[0].mxu0
        %v894 = vadd.f32 %v842, %v893
        %v895 = vpop.f32.mrb[0].mxu0
        %v896 = vpop.f32.mrb[0].mxu0
        %v897 = vpop.f32.mrb[0].mxu0
        %898 = vdwg.mxu0
        %900 = vrot.lane.b32.xlu0 %v894, 120
        %v901 = vpop.permute.xlu0 %900
        %902 = vrot.lane.b32.xlu0 %v894, 112
        %v903 = vpop.permute.xlu0 %902
        %904 = vrot.lane.b32.xlu0 %v894, 104
        %v905 = vpop.permute.xlu0 %904
        %906 = vrot.lane.b32.xlu0 %v894, 96
        %v907 = vpop.permute.xlu0 %906
        %vm908 = vcmask 64512
        %v909 = vsel %vm908, %v894, 0
        %v911 = vsel %vm908, %v907, 0
        %913 = vmatprep.subr.mxu0 0.0
        %914 = vmatpush1.xpose.msra.mxu0 %v911
        %915 = vmatprep.subr.mxu0 0.0
        %916 = vmatpush1.xpose.msra.mxu0 0.0
        %917 = vmatprep.subr.mxu0 0.0
        %918 = vmatpush1.xpose.msra.mxu0 0.0
        %919 = vmatprep.subr.mxu0 0.0
        %920 = vmatpush1.xpose.msra.mxu0 0.0
        %921 = vmatprep.subr.mxu0 0.0
        %922 = vmatpush1.xpose.msra.mxu0 0.0
        %923 = vmatprep.subr.mxu0 0.0
        %924 = vmatpush1.xpose.msra.mxu0 0.0
        %925 = vmatprep.subr.mxu0 0.0
        %926 = vmatpush1.xpose.msra.mxu0 0.0
        %927 = vmatprep.subr.mxu0 0.0
        %928 = vmatpush1.xpose.msra.mxu0 0.0
        %929 = vmatprep.subr.mxu0 0.0
        %930 = vmatpush1.xpose.msra.mxu0 0.0
        %931 = vmatprep.subr.mxu0 0.0
        %932 = vmatpush1.xpose.msra.mxu0 0.0
        %933 = vmatprep.subr.mxu0 0.0
        %934 = vmatpush1.xpose.msra.mxu0 0.0
        %935 = vmatprep.subr.mxu0 0.0
        %936 = vmatpush1.xpose.msra.mxu0 0.0
        %937 = vmatprep.subr.mxu0 0.0
        %938 = vmatpush1.xpose.msra.mxu0 0.0
        %939 = vmatprep.subr.mxu0 0.0
        %940 = vmatpush1.xpose.msra.mxu0 0.0
        %941 = vmatprep.subr.mxu0 0.0
        %942 = vmatpush1.xpose.msra.mxu0 0.0
        %943 = vmatprep.subr.mxu0 0.0
        %944 = vmatpush1.xpose.msra.mxu0 0.0
        %945 = vmatprep.subr.mxu0 0.0
        %946 = vmatpush1.xpose.msra.mxu0 0.0
        %947 = vmatprep.subr.mxu0 0.0
        %948 = vmatpush1.xpose.msra.mxu0 0.0
        %949 = vmatprep.subr.mxu0 0.0
        %950 = vmatpush1.xpose.msra.mxu0 0.0
        %951 = vmatprep.subr.mxu0 0.0
        %952 = vmatpush1.xpose.msra.mxu0 0.0
        %953 = vmatprep.subr.mxu0 0.0
        %954 = vmatpush1.xpose.msra.mxu0 0.0
        %955 = vmatprep.subr.mxu0 0.0
        %956 = vmatpush1.xpose.msra.mxu0 0.0
        %957 = vmatprep.subr.mxu0 0.0
        %958 = vmatpush1.xpose.msra.mxu0 0.0
        %959 = vmatprep.subr.mxu0 0.0
        %960 = vmatpush1.xpose.msra.mxu0 0.0
        %961 = vmatprep.subr.mxu0 0.0
        %962 = vmatpush1.xpose.msra.mxu0 0.0
        %963 = vmatprep.subr.mxu0 0.0
        %964 = vmatpush1.xpose.msra.mxu0 0.0
        %965 = vmatprep.subr.mxu0 0.0
        %966 = vmatpush1.xpose.msra.mxu0 0.0
        %967 = vmatprep.subr.mxu0 0.0
        %968 = vmatpush1.xpose.msra.mxu0 0.0
        %969 = vmatprep.subr.mxu0 0.0
        %970 = vmatpush1.xpose.msra.mxu0 0.0
        %971 = vmatprep.subr.mxu0 0.0
        %972 = vmatpush1.xpose.msra.mxu0 0.0
        %973 = vmatprep.subr.mxu0 0.0
        %974 = vmatpush1.xpose.msra.mxu0 0.0
        %975 = vmatprep.subr.mxu0 0.0
        %976 = vmatpush1.xpose.msra.mxu0 0.0
        %977 = vmatprep.mubr.f32.mxu0 0.0
        %978 = vmatmul.mubr.f32.gmra.mrb[0].mxu0 %v909
        %v979 = vpop.f32.mrb[0].mxu0
        %v980 = vadd.f32 0.0, %v979
        %v981 = vpop.f32.mrb[0].mxu0
        %982 = vdwg.mxu0
        %983 = vrot.lane.b32.xlu0 %v901, 96
        %v984 = vpop.permute.xlu0 %983
        %v985 = vsel %vm908, %v901, 0
        %v987 = vsel %vm908, %v984, 0
        %989 = vmatprep.subr.mxu0 0.0
        %990 = vmatpush1.xpose.msra.mxu0 %v987
        %991 = vmatprep.subr.mxu0 0.0
        %992 = vmatpush1.xpose.msra.mxu0 0.0
        %993 = vmatprep.subr.mxu0 0.0
        %994 = vmatpush1.xpose.msra.mxu0 0.0
        %995 = vmatprep.subr.mxu0 0.0
        %996 = vmatpush1.xpose.msra.mxu0 0.0
        %997 = vmatprep.subr.mxu0 0.0
        %998 = vmatpush1.xpose.msra.mxu0 0.0
        %999 = vmatprep.subr.mxu0 0.0
        %1000 = vmatpush1.xpose.msra.mxu0 0.0
        %1001 = vmatprep.subr.mxu0 0.0
        %1002 = vmatpush1.xpose.msra.mxu0 0.0
        %1003 = vmatprep.subr.mxu0 0.0
        %1004 = vmatpush1.xpose.msra.mxu0 0.0
        %1005 = vmatprep.subr.mxu0 0.0
        %1006 = vmatpush1.xpose.msra.mxu0 0.0
        %1007 = vmatprep.subr.mxu0 0.0
        %1008 = vmatpush1.xpose.msra.mxu0 0.0
        %1009 = vmatprep.subr.mxu0 0.0
        %1010 = vmatpush1.xpose.msra.mxu0 0.0
        %1011 = vmatprep.subr.mxu0 0.0
        %1012 = vmatpush1.xpose.msra.mxu0 0.0
        %1013 = vmatprep.subr.mxu0 0.0
        %1014 = vmatpush1.xpose.msra.mxu0 0.0
        %1015 = vmatprep.subr.mxu0 0.0
        %1016 = vmatpush1.xpose.msra.mxu0 0.0
        %1017 = vmatprep.subr.mxu0 0.0
        %1018 = vmatpush1.xpose.msra.mxu0 0.0
        %1019 = vmatprep.subr.mxu0 0.0
        %1020 = vmatpush1.xpose.msra.mxu0 0.0
        %1021 = vmatprep.subr.mxu0 0.0
        %1022 = vmatpush1.xpose.msra.mxu0 0.0
        %1023 = vmatprep.subr.mxu0 0.0
        %1024 = vmatpush1.xpose.msra.mxu0 0.0
        %1025 = vmatprep.subr.mxu0 0.0
        %1026 = vmatpush1.xpose.msra.mxu0 0.0
        %1027 = vmatprep.subr.mxu0 0.0
        %1028 = vmatpush1.xpose.msra.mxu0 0.0
        %1029 = vmatprep.subr.mxu0 0.0
        %1030 = vmatpush1.xpose.msra.mxu0 0.0
        %1031 = vmatprep.subr.mxu0 0.0
        %1032 = vmatpush1.xpose.msra.mxu0 0.0
        %1033 = vmatprep.subr.mxu0 0.0
        %1034 = vmatpush1.xpose.msra.mxu0 0.0
        %1035 = vmatprep.subr.mxu0 0.0
        %1036 = vmatpush1.xpose.msra.mxu0 0.0
        %1037 = vmatprep.subr.mxu0 0.0
        %1038 = vmatpush1.xpose.msra.mxu0 0.0
        %1039 = vmatprep.subr.mxu0 0.0
        %1040 = vmatpush1.xpose.msra.mxu0 0.0
        %1041 = vmatprep.subr.mxu0 0.0
        %1042 = vmatpush1.xpose.msra.mxu0 0.0
        %1043 = vmatprep.subr.mxu0 0.0
        %1044 = vmatpush1.xpose.msra.mxu0 0.0
        %1045 = vmatprep.subr.mxu0 0.0
        %1046 = vmatpush1.xpose.msra.mxu0 0.0
        %1047 = vmatprep.subr.mxu0 0.0
        %1048 = vmatpush1.xpose.msra.mxu0 0.0
        %1049 = vmatprep.subr.mxu0 0.0
        %1050 = vmatpush1.xpose.msra.mxu0 0.0
        %1051 = vmatprep.subr.mxu0 0.0
        %1052 = vmatpush1.xpose.msra.mxu0 0.0
        %1053 = vmatprep.mubr.f32.mxu0 0.0
        %1054 = vmatmul.mubr.f32.gmra.mrb[0].mxu0 %v985
        %v1055 = vpop.f32.mrb[0].mxu0
        %v1056 = vadd.f32 0.0, %v1055
        %v1057 = vpop.f32.mrb[0].mxu0
        %1058 = vdwg.mxu0
        %1059 = vrot.lane.b32.xlu0 %v903, 96
        %v1060 = vpop.permute.xlu0 %1059
        %v1061 = vsel %vm908, %v903, 0
        %v1063 = vsel %vm908, %v1060, 0
        %1065 = vmatprep.subr.mxu0 0.0
        %1066 = vmatpush1.xpose.msra.mxu0 %v1063
        %1067 = vmatprep.subr.mxu0 0.0
        %1068 = vmatpush1.xpose.msra.mxu0 0.0
        %1069 = vmatprep.subr.mxu0 0.0
        %1070 = vmatpush1.xpose.msra.mxu0 0.0
        %1071 = vmatprep.subr.mxu0 0.0
        %1072 = vmatpush1.xpose.msra.mxu0 0.0
        %1073 = vmatprep.subr.mxu0 0.0
        %1074 = vmatpush1.xpose.msra.mxu0 0.0
        %1075 = vmatprep.subr.mxu0 0.0
        %1076 = vmatpush1.xpose.msra.mxu0 0.0
        %1077 = vmatprep.subr.mxu0 0.0
        %1078 = vmatpush1.xpose.msra.mxu0 0.0
        %1079 = vmatprep.subr.mxu0 0.0
        %1080 = vmatpush1.xpose.msra.mxu0 0.0
        %1081 = vmatprep.subr.mxu0 0.0
        %1082 = vmatpush1.xpose.msra.mxu0 0.0
        %1083 = vmatprep.subr.mxu0 0.0
        %1084 = vmatpush1.xpose.msra.mxu0 0.0
        %1085 = vmatprep.subr.mxu0 0.0
        %1086 = vmatpush1.xpose.msra.mxu0 0.0
        %1087 = vmatprep.subr.mxu0 0.0
        %1088 = vmatpush1.xpose.msra.mxu0 0.0
        %1089 = vmatprep.subr.mxu0 0.0
        %1090 = vmatpush1.xpose.msra.mxu0 0.0
        %1091 = vmatprep.subr.mxu0 0.0
        %1092 = vmatpush1.xpose.msra.mxu0 0.0
        %1093 = vmatprep.subr.mxu0 0.0
        %1094 = vmatpush1.xpose.msra.mxu0 0.0
        %1095 = vmatprep.subr.mxu0 0.0
        %1096 = vmatpush1.xpose.msra.mxu0 0.0
        %1097 = vmatprep.subr.mxu0 0.0
        %1098 = vmatpush1.xpose.msra.mxu0 0.0
        %1099 = vmatprep.subr.mxu0 0.0
        %1100 = vmatpush1.xpose.msra.mxu0 0.0
        %1101 = vmatprep.subr.mxu0 0.0
        %1102 = vmatpush1.xpose.msra.mxu0 0.0
        %1103 = vmatprep.subr.mxu0 0.0
        %1104 = vmatpush1.xpose.msra.mxu0 0.0
        %1105 = vmatprep.subr.mxu0 0.0
        %1106 = vmatpush1.xpose.msra.mxu0 0.0
        %1107 = vmatprep.subr.mxu0 0.0
        %1108 = vmatpush1.xpose.msra.mxu0 0.0
        %1109 = vmatprep.subr.mxu0 0.0
        %1110 = vmatpush1.xpose.msra.mxu0 0.0
        %1111 = vmatprep.subr.mxu0 0.0
        %1112 = vmatpush1.xpose.msra.mxu0 0.0
        %1113 = vmatprep.subr.mxu0 0.0
        %1114 = vmatpush1.xpose.msra.mxu0 0.0
        %1115 = vmatprep.subr.mxu0 0.0
        %1116 = vmatpush1.xpose.msra.mxu0 0.0
        %1117 = vmatprep.subr.mxu0 0.0
        %1118 = vmatpush1.xpose.msra.mxu0 0.0
        %1119 = vmatprep.subr.mxu0 0.0
        %1120 = vmatpush1.xpose.msra.mxu0 0.0
        %1121 = vmatprep.subr.mxu0 0.0
        %1122 = vmatpush1.xpose.msra.mxu0 0.0
        %1123 = vmatprep.subr.mxu0 0.0
        %1124 = vmatpush1.xpose.msra.mxu0 0.0
        %1125 = vmatprep.subr.mxu0 0.0
        %1126 = vmatpush1.xpose.msra.mxu0 0.0
        %1127 = vmatprep.subr.mxu0 0.0
        %1128 = vmatpush1.xpose.msra.mxu0 0.0
        %1129 = vmatprep.mubr.f32.mxu0 0.0
        %1130 = vmatmul.mubr.f32.gmra.mrb[0].mxu0 %v1061
        %v1131 = vpop.f32.mrb[0].mxu0
        %v1132 = vadd.f32 0.0, %v1131
        %v1133 = vpop.f32.mrb[0].mxu0
        %1134 = vdwg.mxu0
        %1135 = vrot.lane.b32.xlu0 %v905, 96
        %v1136 = vpop.permute.xlu0 %1135
        %v1137 = vsel %vm908, %v905, 0
        %v1139 = vsel %vm908, %v1136, 0
        %1141 = vmatprep.subr.mxu0 0.0
        %1142 = vmatpush1.xpose.msra.mxu0 %v1139
        %1143 = vmatprep.subr.mxu0 0.0
        %1144 = vmatpush1.xpose.msra.mxu0 0.0
        %1145 = vmatprep.subr.mxu0 0.0
        %1146 = vmatpush1.xpose.msra.mxu0 0.0
        %1147 = vmatprep.subr.mxu0 0.0
        %1148 = vmatpush1.xpose.msra.mxu0 0.0
        %1149 = vmatprep.subr.mxu0 0.0
        %1150 = vmatpush1.xpose.msra.mxu0 0.0
        %1151 = vmatprep.subr.mxu0 0.0
        %1152 = vmatpush1.xpose.msra.mxu0 0.0
        %1153 = vmatprep.subr.mxu0 0.0
        %1154 = vmatpush1.xpose.msra.mxu0 0.0
        %1155 = vmatprep.subr.mxu0 0.0
        %1156 = vmatpush1.xpose.msra.mxu0 0.0
        %1157 = vmatprep.subr.mxu0 0.0
        %1158 = vmatpush1.xpose.msra.mxu0 0.0
        %1159 = vmatprep.subr.mxu0 0.0
        %1160 = vmatpush1.xpose.msra.mxu0 0.0
        %1161 = vmatprep.subr.mxu0 0.0
        %1162 = vmatpush1.xpose.msra.mxu0 0.0
        %1163 = vmatprep.subr.mxu0 0.0
        %1164 = vmatpush1.xpose.msra.mxu0 0.0
        %1165 = vmatprep.subr.mxu0 0.0
        %1166 = vmatpush1.xpose.msra.mxu0 0.0
        %1167 = vmatprep.subr.mxu0 0.0
        %1168 = vmatpush1.xpose.msra.mxu0 0.0
        %1169 = vmatprep.subr.mxu0 0.0
        %1170 = vmatpush1.xpose.msra.mxu0 0.0
        %1171 = vmatprep.subr.mxu0 0.0
        %1172 = vmatpush1.xpose.msra.mxu0 0.0
        %1173 = vmatprep.subr.mxu0 0.0
        %1174 = vmatpush1.xpose.msra.mxu0 0.0
        %1175 = vmatprep.subr.mxu0 0.0
        %1176 = vmatpush1.xpose.msra.mxu0 0.0
        %1177 = vmatprep.subr.mxu0 0.0
        %1178 = vmatpush1.xpose.msra.mxu0 0.0
        %1179 = vmatprep.subr.mxu0 0.0
        %1180 = vmatpush1.xpose.msra.mxu0 0.0
        %1181 = vmatprep.subr.mxu0 0.0
        %1182 = vmatpush1.xpose.msra.mxu0 0.0
        %1183 = vmatprep.subr.mxu0 0.0
        %1184 = vmatpush1.xpose.msra.mxu0 0.0
        %1185 = vmatprep.subr.mxu0 0.0
        %1186 = vmatpush1.xpose.msra.mxu0 0.0
        %1187 = vmatprep.subr.mxu0 0.0
        %1188 = vmatpush1.xpose.msra.mxu0 0.0
        %1189 = vmatprep.subr.mxu0 0.0
        %1190 = vmatpush1.xpose.msra.mxu0 0.0
        %1191 = vmatprep.subr.mxu0 0.0
        %1192 = vmatpush1.xpose.msra.mxu0 0.0
        %1193 = vmatprep.subr.mxu0 0.0
        %1194 = vmatpush1.xpose.msra.mxu0 0.0
        %1195 = vmatprep.subr.mxu0 0.0
        %1196 = vmatpush1.xpose.msra.mxu0 0.0
        %1197 = vmatprep.subr.mxu0 0.0
        %1198 = vmatpush1.xpose.msra.mxu0 0.0
        %1199 = vmatprep.subr.mxu0 0.0
        %1200 = vmatpush1.xpose.msra.mxu0 0.0
        %1201 = vmatprep.subr.mxu0 0.0
        %1202 = vmatpush1.xpose.msra.mxu0 0.0
        %1203 = vmatprep.subr.mxu0 0.0
        %1204 = vmatpush1.xpose.msra.mxu0 0.0
        %1205 = vmatprep.mubr.f32.mxu0 0.0
        %1206 = vmatmul.mubr.f32.gmra.mrb[0].mxu0 %v1137
        %v1207 = vpop.f32.mrb[0].mxu0
        %v1208 = vadd.f32 0.0, %v1207
        %v1209 = vpop.f32.mrb[0].mxu0
        %1210 = vdwg.mxu0
        %v1211 = vmul.f32 %v980, 0.35355338
        %v1212 = vmul.f32 %v1056, 0.35355338
        %v1213 = vmul.f32 %v1132, 0.35355338
        %v1214 = vmul.f32 %v1208, 0.35355338
        %v1215 = vld [vmem:[%s3] sm:$0xff]
        %v1216 = vadd.f32 %v1211, %v1215
        %v1217 = vadd.f32 %v1212, %v1215
        %v1218 = vadd.f32 %v1213, %v1215
        %v1219 = vadd.f32 %v1214, %v1215
        %v1220 = vsel %vm908, %v1216, -inf
        %1221 = vmax.xlane.f32.xlu0 %v1220
        %v1222 = vpop.xlane.xlu0 %1221
        %v1223 = vsel %vm908, %v1217, -inf
        %1224 = vmax.xlane.f32.xlu0 %v1223
        %v1225 = vpop.xlane.xlu0 %1224
        %v1226 = vsel %vm908, %v1218, -inf
        %1227 = vmax.xlane.f32.xlu0 %v1226
        %v1228 = vpop.xlane.xlu0 %1227
        %v1229 = vsel %vm908, %v1219, -inf
        %1230 = vmax.xlane.f32.xlu0 %v1229
        %v1231 = vpop.xlane.xlu0 %1230
        %v1232 = vsub.f32 %v1216, %v1222
        %v1233 = vsub.f32 %v1217, %v1225
        %v1234 = vsub.f32 %v1218, %v1228
        %v1235 = vsub.f32 %v1219, %v1231
        %v1236 = vmul.f32 %v1232, 1.442695
        %v1237 = vpow.pop %v1236
        %v1238 = vmul.f32 %v1233, 1.442695
        %v1239 = vpow.pop %v1238
        %v1240 = vmul.f32 %v1234, 1.442695
        %v1241 = vpow.pop %v1240
        %v1242 = vmul.f32 %v1235, 1.442695
        %v1243 = vpow.pop %v1242
        %v1244 = vsel %vm908, %v1237, 0.0
        %1245 = vadd.xlane.f32.xlu0 %v1244
        %v1246 = vpop.xlane.xlu0 %1245
        %v1247 = vsel %vm908, %v1239, 0.0
        %1248 = vadd.xlane.f32.xlu0 %v1247
        %v1249 = vpop.xlane.xlu0 %1248
        %v1250 = vsel %vm908, %v1241, 0.0
        %1251 = vadd.xlane.f32.xlu0 %v1250
        %v1252 = vpop.xlane.xlu0 %1251
        %v1253 = vsel %vm908, %v1243, 0.0
        %1254 = vadd.xlane.f32.xlu0 %v1253
        %v1255 = vpop.xlane.xlu0 %1254
        %v1256 = vrcp.pop %v1246
        %v1257 = vrcp.pop %v1249
        %v1258 = vrcp.pop %v1252
        %v1259 = vrcp.pop %v1255
        %v1260 = vmul.f32 %v1237, %v1256
        %v1261 = vmul.f32 %v1239, %v1257
        %v1262 = vmul.f32 %v1241, %v1258
        %v1263 = vmul.f32 %v1243, %v1259
        %1264 = vrot.lane.b32.xlu0 %v894, 64
        %v1265 = vpop.permute.xlu0 %1264
        %v1268 = vsel %vm908, %v1260, 0
        %1270 = vmatprep.subr.mxu0 0.0
        %1271 = vmatpush1.msra.mxu0 %v1265
        %1272 = vmatprep.subr.mxu0 0.0
        %1273 = vmatpush1.msra.mxu0 0.0
        %1274 = vmatprep.subr.mxu0 0.0
        %1275 = vmatpush1.msra.mxu0 0.0
        %1276 = vmatprep.subr.mxu0 0.0
        %1277 = vmatpush1.msra.mxu0 0.0
        %1278 = vmatprep.subr.mxu0 0.0
        %1279 = vmatpush1.msra.mxu0 0.0
        %1280 = vmatprep.subr.mxu0 0.0
        %1281 = vmatpush1.msra.mxu0 0.0
        %1282 = vmatprep.subr.mxu0 0.0
        %1283 = vmatpush1.msra.mxu0 0.0
        %1284 = vmatprep.subr.mxu0 0.0
        %1285 = vmatpush1.msra.mxu0 0.0
        %1286 = vmatprep.subr.mxu0 0.0
        %1287 = vmatpush1.msra.mxu0 0.0
        %1288 = vmatprep.subr.mxu0 0.0
        %1289 = vmatpush1.msra.mxu0 0.0
        %1290 = vmatprep.subr.mxu0 0.0
        %1291 = vmatpush1.msra.mxu0 0.0
        %1292 = vmatprep.subr.mxu0 0.0
        %1293 = vmatpush1.msra.mxu0 0.0
        %1294 = vmatprep.subr.mxu0 0.0
        %1295 = vmatpush1.msra.mxu0 0.0
        %1296 = vmatprep.subr.mxu0 0.0
        %1297 = vmatpush1.msra.mxu0 0.0
        %1298 = vmatprep.subr.mxu0 0.0
        %1299 = vmatpush1.msra.mxu0 0.0
        %1300 = vmatprep.subr.mxu0 0.0
        %1301 = vmatpush1.msra.mxu0 0.0
        %1302 = vmatprep.subr.mxu0 0.0
        %1303 = vmatpush1.msra.mxu0 0.0
        %1304 = vmatprep.subr.mxu0 0.0
        %1305 = vmatpush1.msra.mxu0 0.0
        %1306 = vmatprep.subr.mxu0 0.0
        %1307 = vmatpush1.msra.mxu0 0.0
        %1308 = vmatprep.subr.mxu0 0.0
        %1309 = vmatpush1.msra.mxu0 0.0
        %1310 = vmatprep.subr.mxu0 0.0
        %1311 = vmatpush1.msra.mxu0 0.0
        %1312 = vmatprep.subr.mxu0 0.0
        %1313 = vmatpush1.msra.mxu0 0.0
        %1314 = vmatprep.subr.mxu0 0.0
        %1315 = vmatpush1.msra.mxu0 0.0
        %1316 = vmatprep.subr.mxu0 0.0
        %1317 = vmatpush1.msra.mxu0 0.0
        %1318 = vmatprep.subr.mxu0 0.0
        %1319 = vmatpush1.msra.mxu0 0.0
        %1320 = vmatprep.subr.mxu0 0.0
        %1321 = vmatpush1.msra.mxu0 0.0
        %1322 = vmatprep.subr.mxu0 0.0
        %1323 = vmatpush1.msra.mxu0 0.0
        %1324 = vmatprep.subr.mxu0 0.0
        %1325 = vmatpush1.msra.mxu0 0.0
        %1326 = vmatprep.subr.mxu0 0.0
        %1327 = vmatpush1.msra.mxu0 0.0
        %1328 = vmatprep.subr.mxu0 0.0
        %1329 = vmatpush1.msra.mxu0 0.0
        %1330 = vmatprep.subr.mxu0 0.0
        %1331 = vmatpush1.msra.mxu0 0.0
        %1332 = vmatprep.subr.mxu0 0.0
        %1333 = vmatpush1.msra.mxu0 0.0
        %1334 = vmatprep.mubr.f32.mxu0 0.0
        %1335 = vmatmul.mubr.f32.gmra.mrb[0].mxu0 %v1268
        %v1336 = vpop.f32.mrb[0].mxu0
        %v1337 = vadd.f32 0.0, %v1336
        %v1338 = vpop.f32.mrb[0].mxu0
        %1339 = vdwg.mxu0
        %1340 = vrot.lane.b32.xlu0 %v901, 64
        %v1341 = vpop.permute.xlu0 %1340
        %v1344 = vsel %vm908, %v1261, 0
        %1346 = vmatprep.subr.mxu0 0.0
        %1347 = vmatpush1.msra.mxu0 %v1341
        %1348 = vmatprep.subr.mxu0 0.0
        %1349 = vmatpush1.msra.mxu0 0.0
        %1350 = vmatprep.subr.mxu0 0.0
        %1351 = vmatpush1.msra.mxu0 0.0
        %1352 = vmatprep.subr.mxu0 0.0
        %1353 = vmatpush1.msra.mxu0 0.0
        %1354 = vmatprep.subr.mxu0 0.0
        %1355 = vmatpush1.msra.mxu0 0.0
        %1356 = vmatprep.subr.mxu0 0.0
        %1357 = vmatpush1.msra.mxu0 0.0
        %1358 = vmatprep.subr.mxu0 0.0
        %1359 = vmatpush1.msra.mxu0 0.0
        %1360 = vmatprep.subr.mxu0 0.0
        %1361 = vmatpush1.msra.mxu0 0.0
        %1362 = vmatprep.subr.mxu0 0.0
        %1363 = vmatpush1.msra.mxu0 0.0
        %1364 = vmatprep.subr.mxu0 0.0
        %1365 = vmatpush1.msra.mxu0 0.0
        %1366 = vmatprep.subr.mxu0 0.0
        %1367 = vmatpush1.msra.mxu0 0.0
        %1368 = vmatprep.subr.mxu0 0.0
        %1369 = vmatpush1.msra.mxu0 0.0
        %1370 = vmatprep.subr.mxu0 0.0
        %1371 = vmatpush1.msra.mxu0 0.0
        %1372 = vmatprep.subr.mxu0 0.0
        %1373 = vmatpush1.msra.mxu0 0.0
        %1374 = vmatprep.subr.mxu0 0.0
        %1375 = vmatpush1.msra.mxu0 0.0
        %1376 = vmatprep.subr.mxu0 0.0
        %1377 = vmatpush1.msra.mxu0 0.0
        %1378 = vmatprep.subr.mxu0 0.0
        %1379 = vmatpush1.msra.mxu0 0.0
        %1380 = vmatprep.subr.mxu0 0.0
        %1381 = vmatpush1.msra.mxu0 0.0
        %1382 = vmatprep.subr.mxu0 0.0
        %1383 = vmatpush1.msra.mxu0 0.0
        %1384 = vmatprep.subr.mxu0 0.0
        %1385 = vmatpush1.msra.mxu0 0.0
        %1386 = vmatprep.subr.mxu0 0.0
        %1387 = vmatpush1.msra.mxu0 0.0
        %1388 = vmatprep.subr.mxu0 0.0
        %1389 = vmatpush1.msra.mxu0 0.0
        %1390 = vmatprep.subr.mxu0 0.0
        %1391 = vmatpush1.msra.mxu0 0.0
        %1392 = vmatprep.subr.mxu0 0.0
        %1393 = vmatpush1.msra.mxu0 0.0
        %1394 = vmatprep.subr.mxu0 0.0
        %1395 = vmatpush1.msra.mxu0 0.0
        %1396 = vmatprep.subr.mxu0 0.0
        %1397 = vmatpush1.msra.mxu0 0.0
        %1398 = vmatprep.subr.mxu0 0.0
        %1399 = vmatpush1.msra.mxu0 0.0
        %1400 = vmatprep.subr.mxu0 0.0
        %1401 = vmatpush1.msra.mxu0 0.0
        %1402 = vmatprep.subr.mxu0 0.0
        %1403 = vmatpush1.msra.mxu0 0.0
        %1404 = vmatprep.subr.mxu0 0.0
        %1405 = vmatpush1.msra.mxu0 0.0
        %1406 = vmatprep.subr.mxu0 0.0
        %1407 = vmatpush1.msra.mxu0 0.0
        %1408 = vmatprep.subr.mxu0 0.0
        %1409 = vmatpush1.msra.mxu0 0.0
        %1410 = vmatprep.mubr.f32.mxu0 0.0
        %1411 = vmatmul.mubr.f32.gmra.mrb[0].mxu0 %v1344
        %v1412 = vpop.f32.mrb[0].mxu0
        %v1413 = vadd.f32 0.0, %v1412
        %v1414 = vpop.f32.mrb[0].mxu0
        %1415 = vdwg.mxu0
        %1416 = vrot.lane.b32.xlu0 %v903, 64
        %v1417 = vpop.permute.xlu0 %1416
        %v1420 = vsel %vm908, %v1262, 0
        %1422 = vmatprep.subr.mxu0 0.0
        %1423 = vmatpush1.msra.mxu0 %v1417
        %1424 = vmatprep.subr.mxu0 0.0
        %1425 = vmatpush1.msra.mxu0 0.0
        %1426 = vmatprep.subr.mxu0 0.0
        %1427 = vmatpush1.msra.mxu0 0.0
        %1428 = vmatprep.subr.mxu0 0.0
        %1429 = vmatpush1.msra.mxu0 0.0
        %1430 = vmatprep.subr.mxu0 0.0
        %1431 = vmatpush1.msra.mxu0 0.0
        %1432 = vmatprep.subr.mxu0 0.0
        %1433 = vmatpush1.msra.mxu0 0.0
        %1434 = vmatprep.subr.mxu0 0.0
        %1435 = vmatpush1.msra.mxu0 0.0
        %1436 = vmatprep.subr.mxu0 0.0
        %1437 = vmatpush1.msra.mxu0 0.0
        %1438 = vmatprep.subr.mxu0 0.0
        %1439 = vmatpush1.msra.mxu0 0.0
        %1440 = vmatprep.subr.mxu0 0.0
        %1441 = vmatpush1.msra.mxu0 0.0
        %1442 = vmatprep.subr.mxu0 0.0
        %1443 = vmatpush1.msra.mxu0 0.0
        %1444 = vmatprep.subr.mxu0 0.0
        %1445 = vmatpush1.msra.mxu0 0.0
        %1446 = vmatprep.subr.mxu0 0.0
        %1447 = vmatpush1.msra.mxu0 0.0
        %1448 = vmatprep.subr.mxu0 0.0
        %1449 = vmatpush1.msra.mxu0 0.0
        %1450 = vmatprep.subr.mxu0 0.0
        %1451 = vmatpush1.msra.mxu0 0.0
        %1452 = vmatprep.subr.mxu0 0.0
        %1453 = vmatpush1.msra.mxu0 0.0
        %1454 = vmatprep.subr.mxu0 0.0
        %1455 = vmatpush1.msra.mxu0 0.0
        %1456 = vmatprep.subr.mxu0 0.0
        %1457 = vmatpush1.msra.mxu0 0.0
        %1458 = vmatprep.subr.mxu0 0.0
        %1459 = vmatpush1.msra.mxu0 0.0
        %1460 = vmatprep.subr.mxu0 0.0
        %1461 = vmatpush1.msra.mxu0 0.0
        %1462 = vmatprep.subr.mxu0 0.0
        %1463 = vmatpush1.msra.mxu0 0.0
        %1464 = vmatprep.subr.mxu0 0.0
        %1465 = vmatpush1.msra.mxu0 0.0
        %1466 = vmatprep.subr.mxu0 0.0
        %1467 = vmatpush1.msra.mxu0 0.0
        %1468 = vmatprep.subr.mxu0 0.0
        %1469 = vmatpush1.msra.mxu0 0.0
        %1470 = vmatprep.subr.mxu0 0.0
        %1471 = vmatpush1.msra.mxu0 0.0
        %1472 = vmatprep.subr.mxu0 0.0
        %1473 = vmatpush1.msra.mxu0 0.0
        %1474 = vmatprep.subr.mxu0 0.0
        %1475 = vmatpush1.msra.mxu0 0.0
        %1476 = vmatprep.subr.mxu0 0.0
        %1477 = vmatpush1.msra.mxu0 0.0
        %1478 = vmatprep.subr.mxu0 0.0
        %1479 = vmatpush1.msra.mxu0 0.0
        %1480 = vmatprep.subr.mxu0 0.0
        %1481 = vmatpush1.msra.mxu0 0.0
        %1482 = vmatprep.subr.mxu0 0.0
        %1483 = vmatpush1.msra.mxu0 0.0
        %1484 = vmatprep.subr.mxu0 0.0
        %1485 = vmatpush1.msra.mxu0 0.0
        %1486 = vmatprep.mubr.f32.mxu0 0.0
        %1487 = vmatmul.mubr.f32.gmra.mrb[0].mxu0 %v1420
        %v1488 = vpop.f32.mrb[0].mxu0
        %v1489 = vadd.f32 0.0, %v1488
        %v1490 = vpop.f32.mrb[0].mxu0
        %1491 = vdwg.mxu0
        %1492 = vrot.lane.b32.xlu0 %v905, 64
        %v1493 = vpop.permute.xlu0 %1492
        %v1496 = vsel %vm908, %v1263, 0
        %1498 = vmatprep.subr.mxu0 0.0
        %1499 = vmatpush1.msra.mxu0 %v1493
        %1500 = vmatprep.subr.mxu0 0.0
        %1501 = vmatpush1.msra.mxu0 0.0
        %1502 = vmatprep.subr.mxu0 0.0
        %1503 = vmatpush1.msra.mxu0 0.0
        %1504 = vmatprep.subr.mxu0 0.0
        %1505 = vmatpush1.msra.mxu0 0.0
        %1506 = vmatprep.subr.mxu0 0.0
        %1507 = vmatpush1.msra.mxu0 0.0
        %1508 = vmatprep.subr.mxu0 0.0
        %1509 = vmatpush1.msra.mxu0 0.0
        %1510 = vmatprep.subr.mxu0 0.0
        %1511 = vmatpush1.msra.mxu0 0.0
        %1512 = vmatprep.subr.mxu0 0.0
        %1513 = vmatpush1.msra.mxu0 0.0
        %1514 = vmatprep.subr.mxu0 0.0
        %1515 = vmatpush1.msra.mxu0 0.0
        %1516 = vmatprep.subr.mxu0 0.0
        %1517 = vmatpush1.msra.mxu0 0.0
        %1518 = vmatprep.subr.mxu0 0.0
        %1519 = vmatpush1.msra.mxu0 0.0
        %1520 = vmatprep.subr.mxu0 0.0
        %1521 = vmatpush1.msra.mxu0 0.0
        %1522 = vmatprep.subr.mxu0 0.0
        %1523 = vmatpush1.msra.mxu0 0.0
        %1524 = vmatprep.subr.mxu0 0.0
        %1525 = vmatpush1.msra.mxu0 0.0
        %1526 = vmatprep.subr.mxu0 0.0
        %1527 = vmatpush1.msra.mxu0 0.0
        %1528 = vmatprep.subr.mxu0 0.0
        %1529 = vmatpush1.msra.mxu0 0.0
        %1530 = vmatprep.subr.mxu0 0.0
        %1531 = vmatpush1.msra.mxu0 0.0
        %1532 = vmatprep.subr.mxu0 0.0
        %1533 = vmatpush1.msra.mxu0 0.0
        %1534 = vmatprep.subr.mxu0 0.0
        %1535 = vmatpush1.msra.mxu0 0.0
        %1536 = vmatprep.subr.mxu0 0.0
        %1537 = vmatpush1.msra.mxu0 0.0
        %1538 = vmatprep.subr.mxu0 0.0
        %1539 = vmatpush1.msra.mxu0 0.0
        %1540 = vmatprep.subr.mxu0 0.0
        %1541 = vmatpush1.msra.mxu0 0.0
        %1542 = vmatprep.subr.mxu0 0.0
        %1543 = vmatpush1.msra.mxu0 0.0
        %1544 = vmatprep.subr.mxu0 0.0
        %1545 = vmatpush1.msra.mxu0 0.0
        %1546 = vmatprep.subr.mxu0 0.0
        %1547 = vmatpush1.msra.mxu0 0.0
        %1548 = vmatprep.subr.mxu0 0.0
        %1549 = vmatpush1.msra.mxu0 0.0
        %1550 = vmatprep.subr.mxu0 0.0
        %1551 = vmatpush1.msra.mxu0 0.0
        %1552 = vmatprep.subr.mxu0 0.0
        %1553 = vmatpush1.msra.mxu0 0.0
        %1554 = vmatprep.subr.mxu0 0.0
        %1555 = vmatpush1.msra.mxu0 0.0
        %1556 = vmatprep.subr.mxu0 0.0
        %1557 = vmatpush1.msra.mxu0 0.0
        %1558 = vmatprep.subr.mxu0 0.0
        %1559 = vmatpush1.msra.mxu0 0.0
        %1560 = vmatprep.subr.mxu0 0.0
        %1561 = vmatpush1.msra.mxu0 0.0
        %1562 = vmatprep.mubr.f32.mxu0 0.0
        %1563 = vmatmul.mubr.f32.gmra.mrb[0].mxu0 %v1496
        %v1564 = vpop.f32.mrb[0].mxu0
        %v1565 = vadd.f32 0.0, %v1564
        %v1566 = vpop.f32.mrb[0].mxu0
        %1567 = vdwg.mxu0
        %1569 = vrot.lane.b32.xlu0 %v1413, 8
        %v1570 = vpop.permute.xlu0 %1569
        %1573 = vrot.lane.b32.xlu0 %v1489, 16
        %v1574 = vpop.permute.xlu0 %1573
        %1577 = vrot.lane.b32.xlu0 %v1565, 24
        %v1578 = vpop.permute.xlu0 %1577
        %v1580 = vsel %vm908, %v1337, %v1570
        %vm1581 = vcmask 130048
        %v1582 = vsel %vm1581, %v1580, %v1574
        %vm1583 = vcmask 195584
        %v1584 = vsel %vm1583, %v1582, %v1578
        %v1585 = vpack.c.bf16 %v1584, %v1584
        %v1586 = vld [vmem:[%s747] sm:$0xf]
        %v1587 = vld [vmem:[%s747 + $0x4] sm:$0xf]
        %v1588 = vld [vmem:[%s747 + $0x8] sm:$0xf]
        %v1589 = vld [vmem:[%s747 + $0xc] sm:$0xf]
        %v1590 = vld [vmem:[%s750] sm:$0x1]
        %v1592 = vlaneseq
        %v1593 = vshrl.u32 %v1592, 7
        %v1594 = vsub.s32 0, %v1593
        %v1595 = vrot.slane %v1590, %v1594
        %v1601 = vunpack.c.l.b16 %v1586
        %v1602 = vunpack.c.l.b16 %v1587
        %v1603 = vunpack.c.l.b16 %v1588
        %v1604 = vunpack.c.l.b16 %v1589
        %v1605 = vpack.c.b16 %v1602, %v1601
        %v1606 = vpack.c.b16 %v1604, %v1603
        %v1610 = vsel %vm803, %v1585, 0
        %1612 = vmatprep.subr.bf16.mxu0 0
        %1613 = vmatpush1.bf16.msra.mxu0 %v1605
        %1614 = vmatprep.subr.bf16.mxu0 0
        %1615 = vmatpush1.bf16.msra.mxu0 %v1606
        %1616 = vmatprep.subr.bf16.mxu0 0
        %1617 = vmatpush1.bf16.msra.mxu0 0
        %1618 = vmatprep.subr.bf16.mxu0 0
        %1619 = vmatpush1.bf16.msra.mxu0 0
        %1620 = vmatprep.subr.bf16.mxu0 0
        %1621 = vmatpush1.bf16.msra.mxu0 0
        %1622 = vmatprep.subr.bf16.mxu0 0
        %1623 = vmatpush1.bf16.msra.mxu0 0
        %1624 = vmatprep.subr.bf16.mxu0 0
        %1625 = vmatpush1.bf16.msra.mxu0 0
        %1626 = vmatprep.subr.bf16.mxu0 0
        %1627 = vmatpush1.bf16.msra.mxu0 0
        %1628 = vmatprep.subr.bf16.mxu0 0
        %1629 = vmatpush1.bf16.msra.mxu0 0
        %1630 = vmatprep.subr.bf16.mxu0 0
        %1631 = vmatpush1.bf16.msra.mxu0 0
        %1632 = vmatprep.subr.bf16.mxu0 0
        %1633 = vmatpush1.bf16.msra.mxu0 0
        %1634 = vmatprep.subr.bf16.mxu0 0
        %1635 = vmatpush1.bf16.msra.mxu0 0
        %1636 = vmatprep.subr.bf16.mxu0 0
        %1637 = vmatpush1.bf16.msra.mxu0 0
        %1638 = vmatprep.subr.bf16.mxu0 0
        %1639 = vmatpush1.bf16.msra.mxu0 0
        %1640 = vmatprep.subr.bf16.mxu0 0
        %1641 = vmatpush1.bf16.msra.mxu0 0
        %1642 = vmatprep.subr.bf16.mxu0 0
        %1643 = vmatpush1.bf16.msra.mxu0 0
        %1644 = vmatprep.mubr.bf16.mxu0 0
        %1645 = vmatmul.mubr.bf16.gmra.mrb[0].mxu0 %v1610
        %v1646 = vpop.f32.mrb[0].mxu0
        %v1647 = vadd.f32 %v1595, %v1646
        %v1648 = vpop.f32.mrb[0].mxu0
        %v1649 = vpop.f32.mrb[0].mxu0
        %v1650 = vpop.f32.mrb[0].mxu0
        %1651 = vdwg.mxu0
        %v1652 = vadd.f32 %v800, %v1647
        %v1653 = vld [vmem:[%s753] sm:$0x1]
        %v1654 = vld [vmem:[%s756] sm:$0x1]
        %v1655 = vsel %vm803, %v1652, 0.0
        %1656 = vadd.xlane.f32.xlu0 %v1655
        %v1657 = vpop.xlane.xlu0 %1656
        %v1658 = vmul.f32 %v1657, %v807
        %v1659 = vsub.f32 %v1652, %v1658
        %v1660 = vmul.f32 %v1659, %v1659
        %v1661 = vsel %vm803, %v1660, 0.0
        %1662 = vadd.xlane.f32.xlu0 %v1661
        %v1663 = vpop.xlane.xlu0 %1662
        %v1664 = vmul.f32 %v1663, %v807
        %v1665 = vadd.f32 %v1664, 1e-05
        %v1666 = vrsqrt.pop %v1665
        %v1667 = vmul.f32 %v1659, %v1666
        %v1669 = vlaneseq
        %v1670 = vshrl.u32 %v1669, 7
        %v1671 = vsub.s32 0, %v1670
        %v1672 = vrot.slane %v1653, %v1671
        %v1674 = vmul.f32 %v1667, %v1672
        %v1676 = vlaneseq
        %v1677 = vshrl.u32 %v1676, 7
        %v1678 = vsub.s32 0, %v1677
        %v1679 = vrot.slane %v1654, %v1678
        %v1681 = vadd.f32 %v1674, %v1679
        %v1682 = vpack.c.bf16 %v1681, %v1681
        %v1683 = vld [vmem:[%s761] sm:$0xf]
        %v1684 = vld [vmem:[%s761 + $0x4] sm:$0xf]
        %v1685 = vld [vmem:[%s761 + $0x8] sm:$0xf]
        %v1686 = vld [vmem:[%s761 + $0xc] sm:$0xf]
        %v1687 = vld [vmem:[%s764] sm:$0x1]
        %v1689 = vlaneseq
        %v1690 = vshrl.u32 %v1689, 7
        %v1691 = vsub.s32 0, %v1690
        %v1692 = vrot.slane %v1687, %v1691
        %v1698 = vunpack.c.l.b16 %v1683
        %v1699 = vunpack.c.l.b16 %v1684
        %v1700 = vunpack.c.l.b16 %v1685
        %v1701 = vunpack.c.l.b16 %v1686
        %v1702 = vpack.c.b16 %v1699, %v1698
        %v1703 = vpack.c.b16 %v1701, %v1700
        %v1707 = vsel %vm803, %v1682, 0
        %1709 = vmatprep.subr.bf16.mxu0 0
        %1710 = vmatpush1.bf16.msra.mxu0 %v1702
        %1711 = vmatprep.subr.bf16.mxu0 0
        %1712 = vmatpush1.bf16.msra.mxu0 %v1703
        %1713 = vmatprep.subr.bf16.mxu0 0
        %1714 = vmatpush1.bf16.msra.mxu0 0
        %1715 = vmatprep.subr.bf16.mxu0 0
        %1716 = vmatpush1.bf16.msra.mxu0 0
        %1717 = vmatprep.subr.bf16.mxu0 0
        %1718 = vmatpush1.bf16.msra.mxu0 0
        %1719 = vmatprep.subr.bf16.mxu0 0
        %1720 = vmatpush1.bf16.msra.mxu0 0
        %1721 = vmatprep.subr.bf16.mxu0 0
        %1722 = vmatpush1.bf16.msra.mxu0 0
        %1723 = vmatprep.subr.bf16.mxu0 0
        %1724 = vmatpush1.bf16.msra.mxu0 0
        %1725 = vmatprep.subr.bf16.mxu0 0
        %1726 = vmatpush1.bf16.msra.mxu0 0
        %1727 = vmatprep.subr.bf16.mxu0 0
        %1728 = vmatpush1.bf16.msra.mxu0 0
        %1729 = vmatprep.subr.bf16.mxu0 0
        %1730 = vmatpush1.bf16.msra.mxu0 0
        %1731 = vmatprep.subr.bf16.mxu0 0
        %1732 = vmatpush1.bf16.msra.mxu0 0
        %1733 = vmatprep.subr.bf16.mxu0 0
        %1734 = vmatpush1.bf16.msra.mxu0 0
        %1735 = vmatprep.subr.bf16.mxu0 0
        %1736 = vmatpush1.bf16.msra.mxu0 0
        %1737 = vmatprep.subr.bf16.mxu0 0
        %1738 = vmatpush1.bf16.msra.mxu0 0
        %1739 = vmatprep.subr.bf16.mxu0 0
        %1740 = vmatpush1.bf16.msra.mxu0 0
        %1741 = vmatprep.mubr.bf16.mxu0 0
        %1742 = vmatmul.mubr.bf16.gmra.mrb[0].mxu0 %v1707
        %v1743 = vpop.f32.mrb[0].mxu0
        %v1744 = vadd.f32 %v1692, %v1743
        %v1745 = vpop.f32.mrb[0].mxu0
        %v1746 = vpop.f32.mrb[0].mxu0
        %v1747 = vpop.f32.mrb[0].mxu0
        %1748 = vdwg.mxu0
        %v1749 = vmul.f32 %v1744, 1.702
        %v1750 = vxor.u32 %v1749, 2147483648
        %v1751 = vmul.f32 %v1750, 1.442695
        %v1752 = vpow.pop %v1751
        %v1753 = vadd.f32 %v1752, 1.0
        %v1754 = vrcp.pop %v1753
        %v1755 = vmul.f32 1.0, %v1754
        %v1756 = vmul.f32 %v1744, %v1755
        %v1757 = vpack.c.bf16 %v1756, %v1756
        %v1758 = vld [vmem:[%s769] sm:$0xf]
        %v1759 = vld [vmem:[%s769 + $0x4] sm:$0xf]
        %v1760 = vld [vmem:[%s769 + $0x8] sm:$0xf]
        %v1761 = vld [vmem:[%s769 + $0xc] sm:$0xf]
        %v1762 = vld [vmem:[%s769 + $0x10] sm:$0xf]
        %v1763 = vld [vmem:[%s769 + $0x14] sm:$0xf]
        %v1764 = vld [vmem:[%s769 + $0x18] sm:$0xf]
        %v1765 = vld [vmem:[%s769 + $0x1c] sm:$0xf]
        %v1766 = vld [vmem:[%s769 + $0x20] sm:$0xf]
        %v1767 = vld [vmem:[%s769 + $0x24] sm:$0xf]
        %v1768 = vld [vmem:[%s769 + $0x28] sm:$0xf]
        %v1769 = vld [vmem:[%s769 + $0x2c] sm:$0xf]
        %v1770 = vld [vmem:[%s769 + $0x30] sm:$0xf]
        %v1771 = vld [vmem:[%s769 + $0x34] sm:$0xf]
        %v1772 = vld [vmem:[%s769 + $0x38] sm:$0xf]
        %v1773 = vld [vmem:[%s769 + $0x3c] sm:$0xf]
        %v1774 = vld [vmem:[%s772] sm:$0x1]
        %v1776 = vlaneseq
        %v1777 = vshrl.u32 %v1776, 7
        %v1778 = vsub.s32 0, %v1777
        %v1779 = vrot.slane %v1774, %v1778
        %v1797 = vunpack.c.l.b16 %v1758
        %v1798 = vunpack.c.l.b16 %v1759
        %v1799 = vunpack.c.l.b16 %v1760
        %v1800 = vunpack.c.l.b16 %v1761
        %v1801 = vunpack.c.l.b16 %v1762
        %v1802 = vunpack.c.l.b16 %v1763
        %v1803 = vunpack.c.l.b16 %v1764
        %v1804 = vunpack.c.l.b16 %v1765
        %v1805 = vunpack.c.l.b16 %v1766
        %v1806 = vunpack.c.l.b16 %v1767
        %v1807 = vunpack.c.l.b16 %v1768
        %v1808 = vunpack.c.l.b16 %v1769
        %v1809 = vunpack.c.l.b16 %v1770
        %v1810 = vunpack.c.l.b16 %v1771
        %v1811 = vunpack.c.l.b16 %v1772
        %v1812 = vunpack.c.l.b16 %v1773
        %v1813 = vpack.c.b16 %v1798, %v1797
        %v1814 = vpack.c.b16 %v1800, %v1799
        %v1815 = vpack.c.b16 %v1802, %v1801
        %v1816 = vpack.c.b16 %v1804, %v1803
        %v1817 = vpack.c.b16 %v1806, %v1805
        %v1818 = vpack.c.b16 %v1808, %v1807
        %v1819 = vpack.c.b16 %v1810, %v1809
        %v1820 = vpack.c.b16 %v1812, %v1811
        %1829 = vmatprep.subr.bf16.mxu0 0
        %1830 = vmatpush1.bf16.msra.mxu0 %v1813
        %1831 = vmatprep.subr.bf16.mxu0 0
        %1832 = vmatpush1.bf16.msra.mxu0 %v1814
        %1833 = vmatprep.subr.bf16.mxu0 0
        %1834 = vmatpush1.bf16.msra.mxu0 %v1815
        %1835 = vmatprep.subr.bf16.mxu0 0
        %1836 = vmatpush1.bf16.msra.mxu0 %v1816
        %1837 = vmatprep.subr.bf16.mxu0 0
        %1838 = vmatpush1.bf16.msra.mxu0 %v1817
        %1839 = vmatprep.subr.bf16.mxu0 0
        %1840 = vmatpush1.bf16.msra.mxu0 %v1818
        %1841 = vmatprep.subr.bf16.mxu0 0
        %1842 = vmatpush1.bf16.msra.mxu0 %v1819
        %1843 = vmatprep.subr.bf16.mxu0 0
        %1844 = vmatpush1.bf16.msra.mxu0 %v1820
        %1845 = vmatprep.subr.bf16.mxu0 0
        %1846 = vmatpush1.bf16.msra.mxu0 0
        %1847 = vmatprep.subr.bf16.mxu0 0
        %1848 = vmatpush1.bf16.msra.mxu0 0
        %1849 = vmatprep.subr.bf16.mxu0 0
        %1850 = vmatpush1.bf16.msra.mxu0 0
        %1851 = vmatprep.subr.bf16.mxu0 0
        %1852 = vmatpush1.bf16.msra.mxu0 0
        %1853 = vmatprep.subr.bf16.mxu0 0
        %1854 = vmatpush1.bf16.msra.mxu0 0
        %1855 = vmatprep.subr.bf16.mxu0 0
        %1856 = vmatpush1.bf16.msra.mxu0 0
        %1857 = vmatprep.subr.bf16.mxu0 0
        %1858 = vmatpush1.bf16.msra.mxu0 0
        %1859 = vmatprep.subr.bf16.mxu0 0
        %1860 = vmatpush1.bf16.msra.mxu0 0
        %1861 = vmatprep.mubr.bf16.mxu0 0
        %1862 = vmatmul.mubr.bf16.gmra.mrb[0].mxu0 %v1757
        %v1863 = vpop.f32.mrb[0].mxu0
        %v1864 = vadd.f32 %v1779, %v1863
        %v1865 = vpop.f32.mrb[0].mxu0
        %v1866 = vpop.f32.mrb[0].mxu0
        %v1867 = vpop.f32.mrb[0].mxu0
        %1868 = vdwg.mxu0
        %v1869 = vadd.f32 %v1652, %v1864
        %1870 = vst.msk [vmem:[%s710] sm:$0xff] %vm803, %v1869
        %s1871 = sand.u32 %s466, 1
        %s1872 = scalar_lea.sflag [#allocation3], %s1871
        %s1873 = sand.u32 %s466, 1
        %s1874 = smul.addr %s1873, 8
        %s1875 = scalar_lea.vmem [#allocation2], %s1874
        // Predicated region
        $region93: #{tpu_custom_call.1} parent=83 // pred_check
          %p1876 = pneg %p476
        $region94: #{tpu_custom_call.1} parent=83 // pred_check_branch
          %1878 = sbr.rel (%p1876) target = $region96
        $region95: #{tpu_custom_call.1} parent=83 // pred_region
          %s1880 = ssub.s32 128, 128
          %1881 = vsyncadd %s1872, %s1880
          %s1882 = smul.addr %s34, 128
          %s1883 = scalar_lea.hbm %s16, %s1882
          %s1885 = sshll.u32 %s1875, 4
          %s1886 = int_to_ptr.vmem [resolvable:$true] %s1885
          %1888 = dma.vmem_to_hbm [thread:$0]  %s1886, 128, %s1883, %s1872
        $region96: #{tpu_custom_call.1} parent=83 // pred_fallthru
          _
      $region84: #{tpu_custom_call.1} parent=5 // pred_fallthru
        _
      %p1889 = scmp.le.s32.totalorder 2, %s25
      // Predicated region
      $region97: #{tpu_custom_call.1} parent=5 // pred_check
        %p1890 = pneg %p1889
      $region98: #{tpu_custom_call.1} parent=5 // pred_check_branch
        %1892 = sbr.rel (%p1890) target = $region100
      $region99: #{tpu_custom_call.1} parent=5 // pred_region
        %s1893 = ssub.s32 %s25, 2
        // Predicated region
        $region101: #{tpu_custom_call.1} parent=99 // pred_check
          %p1894 = pneg %p482
        $region102: #{tpu_custom_call.1} parent=99 // pred_check_branch
          %1896 = sbr.rel (%p1894) target = $region104
        $region103: #{tpu_custom_call.1} parent=99 // pred_region
          %s1897 = sand.u32 %s467, 1
          %s1898 = scalar_lea.sflag [#allocation3], %s1897
          %s1899 = sand.u32 %s467, 1
          %s1900 = smul.addr %s1899, 8
          %s1901 = scalar_lea.vmem [#allocation2], %s1900
          %1902 = dma.done %s1898, 128
        $region104: #{tpu_custom_call.1} parent=99 // pred_fallthru
          _
      $region100: #{tpu_custom_call.1} parent=5 // pred_fallthru
        _
    $region6: #{tpu_custom_call.1} parent=1 // loop_footer
      %s29 = sadd.s32 1, %s25
    $region7: #{tpu_custom_call.1} parent=1 // loop_footer_branch
      %24 = sbr.rel target = $region3
    $region8: #{tpu_custom_call.1} parent=1 // loop_exit
      _
    %1903 = vsyncpa [#allocation3], 1
    %s1904 = scalar_lea.sflag [#allocation3], 1
    %1905 = vsyncpa %s1904, 1

</llo_original>
